<compile_context>
chip_gen: v5e
topology: v5e:2x2
jax: 0.10.0
libtpu: 0.0.40
codegen_flags: <defaults>
</compile_context>

<pallas_src>
import functools

import jax
import jax.numpy as jnp
from jax.experimental import pallas as pl
from jax.experimental.pallas import tpu as pltpu

SELU_ALPHA = 1.6732632423543772848170429916717
SELU_SCALE = 1.0507009873554804934193349852946


def _selu_unscaled(x):
    # SELU without the outer `scale` factor -- the scale is folded into the
    # *next* layer's weight matrix at weight-prep time (see mlp_pallas).
    # No clamp on exp: the discarded branch may be inf for large positive x,
    # but jnp.where selects the other branch (forward pass only).
    return jnp.where(x > 0.0, x, SELU_ALPHA * jnp.exp(x) - SELU_ALPHA)


def mlp_kernel(x_ref, w1t_ref, b1_ref, w2t_ref, b2_ref, w3s_ref, b3_ref, o_ref):
    """Fused 3-layer MLP on one row tile.

    x_ref  : (row_tile, d_in)    f32, natural layout (no wrapper transpose)
    w1t    : (hidden, d_in)      f32        b1 : (hidden, 1)
    w2t    : (hidden, hidden)    f32 (*)    b2 : (hidden, 1)
    w3s    : (hidden, out_dim)   f32 (*)    b3 : (1, out_dim)
    o_ref  : (row_tile, out_dim) natural layout (out_dim == full dim)
    (*) SELU_SCALE pre-folded into w2t / w3s.
    """
    prec = jax.lax.Precision.HIGHEST

    # layer 1: h^T = w1^T . x^T  -> (hidden, row_tile), rows on the lane axis.
    h = jax.lax.dot_general(
        w1t_ref[...], x_ref[...],
        dimension_numbers=(((1,), (1,)), ((), ())),
        precision=prec, preferred_element_type=jnp.float32) + b1_ref[...]
    h = _selu_unscaled(h)

    # layer 2: (hidden, hidden) @ (hidden, row_tile), stays rows-on-lanes.
    h = jnp.dot(w2t_ref[...], h, precision=prec,
                preferred_element_type=jnp.float32) + b2_ref[...]
    h = _selu_unscaled(h)

    # layer 3: contract hidden back to natural layout (row_tile, out_dim).
    y = jax.lax.dot_general(
        h, w3s_ref[...],
        dimension_numbers=(((0,), (0,)), ((), ())),
        precision=prec, preferred_element_type=jnp.float32) + b3_ref[...]
    o_ref[...] = y.astype(o_ref.dtype)


def init_mlp_params(key, in_dims, hidden_dim, out_dim, dtype=jnp.float32):
    """Deterministic init matching nn.Linear's uniform(-1/sqrt(fan_in), ...)."""
    total_in = sum(in_dims)
    keys = jax.random.split(key, 6)

    def lin(kw, kb, fan_in, fan_out):
        bound = 1.0 / jnp.sqrt(fan_in)
        w = jax.random.uniform(kw, (fan_in, fan_out), dtype, -bound, bound)
        b = jax.random.uniform(kb, (1, fan_out), dtype, -bound, bound)
        return w, b

    w1, b1 = lin(keys[0], keys[1], total_in, hidden_dim)
    w2, b2 = lin(keys[2], keys[3], hidden_dim, hidden_dim)
    w3, b3 = lin(keys[4], keys[5], hidden_dim, out_dim)
    return dict(w1=w1, b1=b1, w2=w2, b2=b2, w3=w3, b3=b3)


@functools.partial(jax.jit, static_argnames=("row_tile",))
def mlp_pallas(params, x2d, *, row_tile=4096):
    """x2d: (rows, d_total). Returns (rows, out_dim) in x2d's dtype."""
    rows, d_in = x2d.shape
    hidden = params["w1"].shape[1]
    out_dim = params["w3"].shape[1]
    out_dtype = x2d.dtype

    # f32 matmul operands everywhere (correctness + avoids bf16-dot lowering
    # issues); the kernel is memory-bound so this costs nothing.
    if x2d.dtype != jnp.float32:
        x2d = x2d.astype(jnp.float32)

    padded_rows = pl.cdiv(rows, row_tile) * row_tile
    if padded_rows != rows:
        x2d = jnp.pad(x2d, ((0, padded_rows - rows), (0, 0)))
    grid = (padded_rows // row_tile,)

    # Weight prep at trace time (tiny, resident in VMEM across the grid).
    # SELU_SCALE is folded into w2 / w3 so the in-kernel SELU skips one mul.
    w1t = params["w1"].T.astype(jnp.float32)                     # (hidden, d_in)
    w2t = (params["w2"] * SELU_SCALE).T.astype(jnp.float32)      # (hidden, hidden)
    w3s = (params["w3"] * SELU_SCALE).astype(jnp.float32)        # (hidden, out_dim)
    b1 = params["b1"].reshape(hidden, 1).astype(jnp.float32)
    b2 = params["b2"].reshape(hidden, 1).astype(jnp.float32)
    b3 = params["b3"].reshape(1, out_dim).astype(jnp.float32)

    full = lambda shape: pl.BlockSpec(shape, lambda i: (0, 0))

    y = pl.pallas_call(
        mlp_kernel,
        out_shape=jax.ShapeDtypeStruct((padded_rows, out_dim), out_dtype),
        grid=grid,
        in_specs=[
            pl.BlockSpec((row_tile, d_in), lambda i: (i, 0)),   # x row tile
            full((hidden, d_in)),                               # w1^T
            full((hidden, 1)),                                  # b1
            full((hidden, hidden)),                             # scale*w2^T
            full((hidden, 1)),                                  # b2
            full((hidden, out_dim)),                            # scale*w3
            full((1, out_dim)),                                 # b3
        ],
        out_specs=pl.BlockSpec((row_tile, out_dim), lambda i: (i, 0)),
        compiler_params=pltpu.CompilerParams(
            dimension_semantics=("parallel",),
            vmem_limit_bytes=48 * 1024 * 1024),
    )(x2d, w1t, b1, w2t, b2, w3s, b3)

    if padded_rows != rows:
        y = y[:rows]
    return y


def _pick_row_tile(rows, max_tile=8192):
    """Large lane-aligned row tile (multiple of 128).  Keeps >= 2 grid steps
    when the input is big enough so both v7x TensorCores get work; caps at
    max_tile so double-buffered I/O blocks + f32 intermediates stay well under
    VMEM limits on every chip."""
    padded = pl.cdiv(rows, 128) * 128
    if padded <= 128:
        return 128
    two_step = pl.cdiv(padded, 2 * 128) * 128      # guarantees >= 2 grid steps
    return int(min(max_tile, two_step))


def mlp_forward(params, *inputs, in_dims, subsample_indices=None, row_tile=None):
    """Mirrors MLP.forward: concat inputs on last axis, run the fused MLP,
    optional subsampling along axis 1 (plain-JAX glue)."""
    assert len(inputs) == len(in_dims), (
        f"Expected {len(in_dims)} inputs, got {len(inputs)}")
    for i, (x, d) in enumerate(zip(inputs, in_dims)):
        assert x.shape[-1] == d, (
            f"Input {i} has wrong dimension: expected {d}, got {x.shape[-1]}")
    x = jnp.concatenate(inputs, axis=-1)
    lead_shape = x.shape[:-1]
    x2d = x.reshape(-1, x.shape[-1])
    if row_tile is None:
        row_tile = _pick_row_tile(x2d.shape[0])
    y2d = mlp_pallas(params, x2d, row_tile=row_tile)
    y = y2d.reshape(*lead_shape, y2d.shape[-1])
    if subsample_indices is not None:
        y = y[:, subsample_indices, ...]
    return y


def _reference(params, *inputs):
    def selu(x):
        return SELU_SCALE * jnp.where(
            x > 0.0, x, SELU_ALPHA * (jnp.exp(jnp.minimum(x, 0.0)) - 1.0))
    x = jnp.concatenate(inputs, axis=-1).astype(jnp.float32)
    h = selu(x @ params["w1"] + params["b1"])
    h = selu(h @ params["w2"] + params["b2"])
    return h @ params["w3"] + params["b3"]


if __name__ == "__main__":
    key = jax.random.PRNGKey(0)
    k_p, k_a, k_b = jax.random.split(key, 3)

    in_dims = [4, 12]          # total_in_dim = 16
    hidden_dim = 32
    out_dim = 8
    batch, seq = 2, 8          # rows = 16 -> single 128-row tile

    params = init_mlp_params(k_p, in_dims, hidden_dim, out_dim)
    xa = jax.random.normal(k_a, (batch, seq, in_dims[0]), jnp.float32)
    xb = jax.random.normal(k_b, (batch, seq, in_dims[1]), jnp.float32)

    out = jax.block_until_ready(mlp_forward(params, xa, xb, in_dims=in_dims))
    assert out.shape == (batch, seq, out_dim), out.shape

    # correctness vs pure-JAX f32 reference (kernel runs f32 end to end)
    ref = _reference(params, xa, xb)
    max_err = float(jnp.max(jnp.abs(out - ref)))
    assert jnp.allclose(out, ref, atol=1e-3, rtol=1e-3), f"mismatch: {max_err}"

    # also exercise the subsample_indices path
    idx = jnp.array([0, 2, 5])
    out_sub = jax.block_until_ready(
        mlp_forward(params, xa, xb, in_dims=in_dims, subsample_indices=idx))
    assert out_sub.shape == (batch, 3, out_dim)

    print("KERNEL_OK")
</pallas_src>

<mosaic_0001>
module attributes {stable_mosaic.version = 11 : i64} {
  func.func @mlp_kernel(%arg0: i32, %arg1: memref<128x16xf32, #tpu.memory_space<vmem>>, %arg2: memref<32x16xf32, #tpu.memory_space<vmem>>, %arg3: memref<32x1xf32, #tpu.memory_space<vmem>>, %arg4: memref<32x32xf32, #tpu.memory_space<vmem>>, %arg5: memref<32x1xf32, #tpu.memory_space<vmem>>, %arg6: memref<32x8xf32, #tpu.memory_space<vmem>>, %arg7: memref<1x8xf32, #tpu.memory_space<vmem>>, %arg8: memref<128x8xf32, #tpu.memory_space<vmem>>) attributes {dimension_semantics = [#tpu.dimension_semantics<parallel>], iteration_bounds = array<i64: 1>, scalar_prefetch = 0 : i64, scratch_operands = 0 : i64, tpu.core_type = #tpu.core_type<tc>, window_params = [{transform_indices = @transform_0, window_bounds = array<i64: 128, 16>}, {pipeline_mode = #tpu.pipeline_mode<synchronous>, transform_indices = @transform_1, window_bounds = array<i64: 32, 16>}, {pipeline_mode = #tpu.pipeline_mode<synchronous>, transform_indices = @transform_2, window_bounds = array<i64: 32, 1>}, {pipeline_mode = #tpu.pipeline_mode<synchronous>, transform_indices = @transform_3, window_bounds = array<i64: 32, 32>}, {pipeline_mode = #tpu.pipeline_mode<synchronous>, transform_indices = @transform_4, window_bounds = array<i64: 32, 1>}, {pipeline_mode = #tpu.pipeline_mode<synchronous>, transform_indices = @transform_5, window_bounds = array<i64: 32, 8>}, {pipeline_mode = #tpu.pipeline_mode<synchronous>, transform_indices = @transform_6, window_bounds = array<i64: 1, 8>}, {transform_indices = @transform_7, window_bounds = array<i64: 128, 8>}]} {
    %c0 = arith.constant 0 : index
    %c0_0 = arith.constant 0 : index
    %0 = vector.load %arg2[%c0, %c0_0] : memref<32x16xf32, #tpu.memory_space<vmem>>, vector<32x16xf32>
    %c0_1 = arith.constant 0 : index
    %c0_2 = arith.constant 0 : index
    %1 = vector.load %arg1[%c0_1, %c0_2] : memref<128x16xf32, #tpu.memory_space<vmem>>, vector<128x16xf32>
    %cst = arith.constant dense<0.000000e+00> : vector<32x128xf32>
    %2 = tpu.matmul %0, %1, %cst {dimension_numbers = #tpu.dot_dimension_numbers<[1], [1], [0], [0], [0, 0, 1, 0], [], []>, precision = #tpu.contract_precision<fp32>} : vector<32x16xf32>, vector<128x16xf32>, vector<32x128xf32> -> vector<32x128xf32>
    %c0_3 = arith.constant 0 : index
    %c0_4 = arith.constant 0 : index
    %3 = vector.load %arg3[%c0_3, %c0_4] : memref<32x1xf32, #tpu.memory_space<vmem>>, vector<32x1xf32>
    %4 = vector.broadcast %3 : vector<32x1xf32> to vector<32x128xf32>
    %5 = arith.addf %2, %4 : vector<32x128xf32>
    %cst_5 = arith.constant 0.000000e+00 : f32
    %6 = vector.broadcast %cst_5 : f32 to vector<32x128xf32>
    %7 = arith.cmpf ogt, %5, %6 : vector<32x128xf32>
    %8 = math.exp %5 : vector<32x128xf32>
    %cst_6 = arith.constant 1.67326319 : f32
    %9 = vector.broadcast %cst_6 : f32 to vector<32x128xf32>
    %10 = arith.mulf %9, %8 : vector<32x128xf32>
    %cst_7 = arith.constant 1.67326319 : f32
    %11 = vector.broadcast %cst_7 : f32 to vector<32x128xf32>
    %12 = arith.subf %10, %11 : vector<32x128xf32>
    %13 = arith.select %7, %5, %12 : vector<32x128xi1>, vector<32x128xf32>
    %c0_8 = arith.constant 0 : index
    %c0_9 = arith.constant 0 : index
    %14 = vector.load %arg4[%c0_8, %c0_9] : memref<32x32xf32, #tpu.memory_space<vmem>>, vector<32x32xf32>
    %cst_10 = arith.constant dense<0.000000e+00> : vector<32x128xf32>
    %15 = tpu.matmul %14, %13, %cst_10 {dimension_numbers = #tpu.dot_dimension_numbers<[1], [0], [0], [1], [0, 0, 1, 1], [], []>, precision = #tpu.contract_precision<fp32>} : vector<32x32xf32>, vector<32x128xf32>, vector<32x128xf32> -> vector<32x128xf32>
    %c0_11 = arith.constant 0 : index
    %c0_12 = arith.constant 0 : index
    %16 = vector.load %arg5[%c0_11, %c0_12] : memref<32x1xf32, #tpu.memory_space<vmem>>, vector<32x1xf32>
    %17 = vector.broadcast %16 : vector<32x1xf32> to vector<32x128xf32>
    %18 = arith.addf %15, %17 : vector<32x128xf32>
    %cst_13 = arith.constant 0.000000e+00 : f32
    %19 = vector.broadcast %cst_13 : f32 to vector<32x128xf32>
    %20 = arith.cmpf ogt, %18, %19 : vector<32x128xf32>
    %21 = math.exp %18 : vector<32x128xf32>
    %cst_14 = arith.constant 1.67326319 : f32
    %22 = vector.broadcast %cst_14 : f32 to vector<32x128xf32>
    %23 = arith.mulf %22, %21 : vector<32x128xf32>
    %cst_15 = arith.constant 1.67326319 : f32
    %24 = vector.broadcast %cst_15 : f32 to vector<32x128xf32>
    %25 = arith.subf %23, %24 : vector<32x128xf32>
    %26 = arith.select %20, %18, %25 : vector<32x128xi1>, vector<32x128xf32>
    %c0_16 = arith.constant 0 : index
    %c0_17 = arith.constant 0 : index
    %27 = vector.load %arg6[%c0_16, %c0_17] : memref<32x8xf32, #tpu.memory_space<vmem>>, vector<32x8xf32>
    %cst_18 = arith.constant dense<0.000000e+00> : vector<128x8xf32>
    %28 = tpu.matmul %26, %27, %cst_18 {dimension_numbers = #tpu.dot_dimension_numbers<[0], [0], [1], [1], [0, 1, 1, 1], [], []>, precision = #tpu.contract_precision<fp32>} : vector<32x128xf32>, vector<32x8xf32>, vector<128x8xf32> -> vector<128x8xf32>
    %c0_19 = arith.constant 0 : index
    %c0_20 = arith.constant 0 : index
    %29 = vector.load %arg7[%c0_19, %c0_20] : memref<1x8xf32, #tpu.memory_space<vmem>>, vector<1x8xf32>
    %30 = vector.broadcast %29 : vector<1x8xf32> to vector<128x8xf32>
    %31 = arith.addf %28, %30 : vector<128x8xf32>
    %c0_21 = arith.constant 0 : index
    %c0_22 = arith.constant 0 : index
    %32 = vector.load %arg8[%c0_21, %c0_22] : memref<128x8xf32, #tpu.memory_space<vmem>>, vector<128x8xf32>
    tpu.vector_store %arg8[%c0_21, %c0_22], %31 {strides = array<i32>} : memref<128x8xf32, #tpu.memory_space<vmem>>, vector<128x8xf32>,
    return
  }
  func.func @transform_0(%arg0: i32) -> (i32, i32) {
    %c0_i32 = arith.constant 0 : i32
    %c0_i32_0 = arith.constant 0 : i32
    return %arg0, %c0_i32 : i32, i32
  }
  func.func @transform_1(%arg0: i32) -> (i32, i32) {
    %c0_i32 = arith.constant 0 : i32
    %c0_i32_0 = arith.constant 0 : i32
    %c0_i32_1 = arith.constant 0 : i32
    return %c0_i32, %c0_i32_0 : i32, i32
  }
  func.func @transform_2(%arg0: i32) -> (i32, i32) {
    %c0_i32 = arith.constant 0 : i32
    %c0_i32_0 = arith.constant 0 : i32
    %c0_i32_1 = arith.constant 0 : i32
    return %c0_i32, %c0_i32_0 : i32, i32
  }
  func.func @transform_3(%arg0: i32) -> (i32, i32) {
    %c0_i32 = arith.constant 0 : i32
    %c0_i32_0 = arith.constant 0 : i32
    %c0_i32_1 = arith.constant 0 : i32
    return %c0_i32, %c0_i32_0 : i32, i32
  }
  func.func @transform_4(%arg0: i32) -> (i32, i32) {
    %c0_i32 = arith.constant 0 : i32
    %c0_i32_0 = arith.constant 0 : i32
    %c0_i32_1 = arith.constant 0 : i32
    return %c0_i32, %c0_i32_0 : i32, i32
  }
  func.func @transform_5(%arg0: i32) -> (i32, i32) {
    %c0_i32 = arith.constant 0 : i32
    %c0_i32_0 = arith.constant 0 : i32
    %c0_i32_1 = arith.constant 0 : i32
    return %c0_i32, %c0_i32_0 : i32, i32
  }
  func.func @transform_6(%arg0: i32) -> (i32, i32) {
    %c0_i32 = arith.constant 0 : i32
    %c0_i32_0 = arith.constant 0 : i32
    %c0_i32_1 = arith.constant 0 : i32
    return %c0_i32, %c0_i32_0 : i32, i32
  }
  func.func @transform_7(%arg0: i32) -> (i32, i32) {
    %c0_i32 = arith.constant 0 : i32
    %c0_i32_0 = arith.constant 0 : i32
    return %arg0, %c0_i32 : i32, i32
  }
}

</mosaic_0001>

<llo_original>
// kernel: mlp_pallas.1
$region0: #{mlp_pallas.1}
  #allocation0 [shape = 'u32[]', space=smem, size = 0x4, offset = 0x4, fixed_abs, tag = 'smem constant byte address 0x4 - core index']
  #allocation1 [shape = 'u32[72,128]{1,0:T(1,128)}', space=vmem, size = 0x9000, scoped, tag = 'internal scratch']
  %s0 = inlined_call_operand.vmem [shape: f32[128,16], index: 0, kind: input, shape index: {}]
  %s1 = inlined_call_operand.vmem [shape: f32[32,16], index: 1, kind: input, shape index: {}]
  %s2 = inlined_call_operand.vmem [shape: f32[32,1], index: 2, kind: input, shape index: {}]
  %s3 = inlined_call_operand.vmem [shape: f32[32,32], index: 3, kind: input, shape index: {}]
  %s4 = inlined_call_operand.vmem [shape: f32[32,1], index: 4, kind: input, shape index: {}]
  %s5 = inlined_call_operand.vmem [shape: f32[32,8], index: 5, kind: input, shape index: {}]
  %s6 = inlined_call_operand.vmem [shape: f32[1,8], index: 6, kind: input, shape index: {}]
  %s7 = inlined_call_operand.vmem [shape: f32[128,8], index: 7, kind: output, shape index: {}]
  %s8 = sld [smem:[#allocation0]]
  $region38: #{mlp_pallas.1} parent=0
    _
  %s10 = ssub.s32 1, %s8
  %s11 = scalar_select 0, %s10, %s8
  // Predicated region
  $region2: #{mlp_pallas.1} parent=0 // pred_check
    _
  $region3: #{mlp_pallas.1} parent=0 // pred_check_branch
    %13 = sbr.rel (0) target = $region5
  $region4: #{mlp_pallas.1} parent=0 // pred_region
    _
  $region5: #{mlp_pallas.1} parent=0 // pred_fallthru
    _
  // Predicated region
  $region6: #{mlp_pallas.1} parent=0 // pred_check
    _
  $region7: #{mlp_pallas.1} parent=0 // pred_check_branch
    %15 = sbr.rel (0) target = $region9
  $region8: #{mlp_pallas.1} parent=0 // pred_region
    _
  $region9: #{mlp_pallas.1} parent=0 // pred_fallthru
    _
  // Predicated region
  $region10: #{mlp_pallas.1} parent=0 // pred_check
    _
  $region11: #{mlp_pallas.1} parent=0 // pred_check_branch
    %17 = sbr.rel (0) target = $region13
  $region12: #{mlp_pallas.1} parent=0 // pred_region
    _
  $region13: #{mlp_pallas.1} parent=0 // pred_fallthru
    _
  // Predicated region
  $region14: #{mlp_pallas.1} parent=0 // pred_check
    _
  $region15: #{mlp_pallas.1} parent=0 // pred_check_branch
    %19 = sbr.rel (0) target = $region17
  $region16: #{mlp_pallas.1} parent=0 // pred_region
    _
  $region17: #{mlp_pallas.1} parent=0 // pred_fallthru
    _
  // Predicated region
  $region18: #{mlp_pallas.1} parent=0 // pred_check
    _
  $region19: #{mlp_pallas.1} parent=0 // pred_check_branch
    %21 = sbr.rel (0) target = $region21
  $region20: #{mlp_pallas.1} parent=0 // pred_region
    _
  $region21: #{mlp_pallas.1} parent=0 // pred_fallthru
    _
  // Predicated region
  $region22: #{mlp_pallas.1} parent=0 // pred_check
    _
  $region23: #{mlp_pallas.1} parent=0 // pred_check_branch
    %23 = sbr.rel (0) target = $region25
  $region24: #{mlp_pallas.1} parent=0 // pred_region
    _
  $region25: #{mlp_pallas.1} parent=0 // pred_fallthru
    _
  // Predicated region
  $region26: #{mlp_pallas.1} parent=0 // pred_check
    _
  $region27: #{mlp_pallas.1} parent=0 // pred_check_branch
    %25 = sbr.rel (0) target = $region29
  $region28: #{mlp_pallas.1} parent=0 // pred_region
    _
  $region29: #{mlp_pallas.1} parent=0 // pred_fallthru
    _
  %v26 = vld [vmem:[%s1] sm:$0xff]
  %v27 = vld [vmem:[%s1 + $0x8] sm:$0xff]
  %v28 = vld [vmem:[%s1 + $0x10] sm:$0xff]
  %v29 = vld [vmem:[%s1 + $0x18] sm:$0xff]
  %v30 = vld [vmem:[%s0] sm:$0xff]
  %v31 = vld [vmem:[%s0 + $0x8] sm:$0xff]
  %v32 = vld [vmem:[%s0 + $0x10] sm:$0xff]
  %v33 = vld [vmem:[%s0 + $0x18] sm:$0xff]
  %v34 = vld [vmem:[%s0 + $0x20] sm:$0xff]
  %v35 = vld [vmem:[%s0 + $0x28] sm:$0xff]
  %v36 = vld [vmem:[%s0 + $0x30] sm:$0xff]
  %v37 = vld [vmem:[%s0 + $0x38] sm:$0xff]
  %v38 = vld [vmem:[%s0 + $0x40] sm:$0xff]
  %v39 = vld [vmem:[%s0 + $0x48] sm:$0xff]
  %v40 = vld [vmem:[%s0 + $0x50] sm:$0xff]
  %v41 = vld [vmem:[%s0 + $0x58] sm:$0xff]
  %v42 = vld [vmem:[%s0 + $0x60] sm:$0xff]
  %v43 = vld [vmem:[%s0 + $0x68] sm:$0xff]
  %v44 = vld [vmem:[%s0 + $0x70] sm:$0xff]
  %v45 = vld [vmem:[%s0 + $0x78] sm:$0xff]
  %v46 = vld [vmem:[%s2] sm:$0xff]
  %v47 = vld [vmem:[%s2 + $0x8] sm:$0xff]
  %v48 = vld [vmem:[%s2 + $0x10] sm:$0xff]
  %v49 = vld [vmem:[%s2 + $0x18] sm:$0xff]
  %51 = vset.pattern.permute.xlu0 0
  %52 = vperm.xlu0 %51, %v46
  %v53 = vpop.permute.xlu0 %52
  %56 = vset.pattern.permute.xlu0 0
  %57 = vperm.xlu0 %56, %v47
  %v58 = vpop.permute.xlu0 %57
  %61 = vset.pattern.permute.xlu0 0
  %62 = vperm.xlu0 %61, %v48
  %v63 = vpop.permute.xlu0 %62
  %66 = vset.pattern.permute.xlu0 0
  %67 = vperm.xlu0 %66, %v49
  %v68 = vpop.permute.xlu0 %67
  %vm70 = vcmask 130048
  %v72 = vsel %vm70, %v26, 0
  %v75 = vsel %vm70, %v27, 0
  %v78 = vsel %vm70, %v28, 0
  %v81 = vsel %vm70, %v29, 0
  %v84 = vsel %vm70, %v30, 0
  %v87 = vsel %vm70, %v31, 0
  %v90 = vsel %vm70, %v32, 0
  %v93 = vsel %vm70, %v33, 0
  %v96 = vsel %vm70, %v34, 0
  %v99 = vsel %vm70, %v35, 0
  %v102 = vsel %vm70, %v36, 0
  %v105 = vsel %vm70, %v37, 0
  %v108 = vsel %vm70, %v38, 0
  %v111 = vsel %vm70, %v39, 0
  %v114 = vsel %vm70, %v40, 0
  %v117 = vsel %vm70, %v41, 0
  %v120 = vsel %vm70, %v42, 0
  %v123 = vsel %vm70, %v43, 0
  %v126 = vsel %vm70, %v44, 0
  %v129 = vsel %vm70, %v45, 0
  %v131 = vand.u32 %v129, 4294901760
  %132 = vmatpush.xpose.msra.mxu0 %v131
  %v133 = vand.u32 %v126, 4294901760
  %134 = vmatpush.xpose.msra.mxu0 %v133
  %v135 = vand.u32 %v123, 4294901760
  %136 = vmatpush.xpose.msra.mxu0 %v135
  %v137 = vand.u32 %v120, 4294901760
  %138 = vmatpush.xpose.msra.mxu0 %v137
  %v139 = vand.u32 %v117, 4294901760
  %140 = vmatpush.xpose.msra.mxu0 %v139
  %v141 = vand.u32 %v114, 4294901760
  %142 = vmatpush.xpose.msra.mxu0 %v141
  %v143 = vand.u32 %v111, 4294901760
  %144 = vmatpush.xpose.msra.mxu0 %v143
  %v145 = vand.u32 %v108, 4294901760
  %146 = vmatpush.xpose.msra.mxu0 %v145
  %v147 = vand.u32 %v105, 4294901760
  %148 = vmatpush.xpose.msra.mxu0 %v147
  %v149 = vand.u32 %v102, 4294901760
  %150 = vmatpush.xpose.msra.mxu0 %v149
  %v151 = vand.u32 %v99, 4294901760
  %152 = vmatpush.xpose.msra.mxu0 %v151
  %v153 = vand.u32 %v96, 4294901760
  %154 = vmatpush.xpose.msra.mxu0 %v153
  %v155 = vand.u32 %v93, 4294901760
  %156 = vmatpush.xpose.msra.mxu0 %v155
  %v157 = vand.u32 %v90, 4294901760
  %158 = vmatpush.xpose.msra.mxu0 %v157
  %v159 = vand.u32 %v87, 4294901760
  %160 = vmatpush.xpose.msra.mxu0 %v159
  %v161 = vand.u32 %v84, 4294901760
  %162 = vmatpush.xpose.msra.mxu0 %v161
  %v163 = vand.u32 %v72, 4294901760
  %v164 = vsub.f32 %v72, %v163
  %v165 = vand.u32 %v164, 4294901760
  %v166 = vsub.f32 %v164, %v165
  %v167 = vand.u32 %v166, 4294901760
  %168 = vmatmul.f32.gmra.mxu0 %v167
  %v169 = vpop.f32.mrf.mxu0
  %v170 = vadd.f32 %v53, %v169
  %v171 = vand.u32 %v75, 4294901760
  %v172 = vsub.f32 %v75, %v171
  %v173 = vand.u32 %v172, 4294901760
  %v174 = vsub.f32 %v172, %v173
  %v175 = vand.u32 %v174, 4294901760
  %176 = vmatmul.f32.gmra.mxu0 %v175
  %v177 = vpop.f32.mrf.mxu0
  %v178 = vadd.f32 %v58, %v177
  %v179 = vand.u32 %v78, 4294901760
  %v180 = vsub.f32 %v78, %v179
  %v181 = vand.u32 %v180, 4294901760
  %v182 = vsub.f32 %v180, %v181
  %v183 = vand.u32 %v182, 4294901760
  %184 = vmatmul.f32.gmra.mxu0 %v183
  %v185 = vpop.f32.mrf.mxu0
  %v186 = vadd.f32 %v63, %v185
  %v187 = vand.u32 %v81, 4294901760
  %v188 = vsub.f32 %v81, %v187
  %v189 = vand.u32 %v188, 4294901760
  %v190 = vsub.f32 %v188, %v189
  %v191 = vand.u32 %v190, 4294901760
  %192 = vmatmul.f32.gmra.mxu0 %v191
  %v193 = vpop.f32.mrf.mxu0
  %v194 = vadd.f32 %v68, %v193
  %195 = vdwg.mxu0
  %v196 = vand.u32 %v129, 4294901760
  %v197 = vsub.f32 %v129, %v196
  %v198 = vand.u32 %v197, 4294901760
  %v199 = vsub.f32 %v197, %v198
  %v200 = vand.u32 %v199, 4294901760
  %201 = vmatpush.xpose.msra.mxu0 %v200
  %v202 = vand.u32 %v126, 4294901760
  %v203 = vsub.f32 %v126, %v202
  %v204 = vand.u32 %v203, 4294901760
  %v205 = vsub.f32 %v203, %v204
  %v206 = vand.u32 %v205, 4294901760
  %207 = vmatpush.xpose.msra.mxu0 %v206
  %v208 = vand.u32 %v123, 4294901760
  %v209 = vsub.f32 %v123, %v208
  %v210 = vand.u32 %v209, 4294901760
  %v211 = vsub.f32 %v209, %v210
  %v212 = vand.u32 %v211, 4294901760
  %213 = vmatpush.xpose.msra.mxu0 %v212
  %v214 = vand.u32 %v120, 4294901760
  %v215 = vsub.f32 %v120, %v214
  %v216 = vand.u32 %v215, 4294901760
  %v217 = vsub.f32 %v215, %v216
  %v218 = vand.u32 %v217, 4294901760
  %219 = vmatpush.xpose.msra.mxu0 %v218
  %v220 = vand.u32 %v117, 4294901760
  %v221 = vsub.f32 %v117, %v220
  %v222 = vand.u32 %v221, 4294901760
  %v223 = vsub.f32 %v221, %v222
  %v224 = vand.u32 %v223, 4294901760
  %225 = vmatpush.xpose.msra.mxu0 %v224
  %v226 = vand.u32 %v114, 4294901760
  %v227 = vsub.f32 %v114, %v226
  %v228 = vand.u32 %v227, 4294901760
  %v229 = vsub.f32 %v227, %v228
  %v230 = vand.u32 %v229, 4294901760
  %231 = vmatpush.xpose.msra.mxu0 %v230
  %v232 = vand.u32 %v111, 4294901760
  %v233 = vsub.f32 %v111, %v232
  %v234 = vand.u32 %v233, 4294901760
  %v235 = vsub.f32 %v233, %v234
  %v236 = vand.u32 %v235, 4294901760
  %237 = vmatpush.xpose.msra.mxu0 %v236
  %v238 = vand.u32 %v108, 4294901760
  %v239 = vsub.f32 %v108, %v238
  %v240 = vand.u32 %v239, 4294901760
  %v241 = vsub.f32 %v239, %v240
  %v242 = vand.u32 %v241, 4294901760
  %243 = vmatpush.xpose.msra.mxu0 %v242
  %v244 = vand.u32 %v105, 4294901760
  %v245 = vsub.f32 %v105, %v244
  %v246 = vand.u32 %v245, 4294901760
  %v247 = vsub.f32 %v245, %v246
  %v248 = vand.u32 %v247, 4294901760
  %249 = vmatpush.xpose.msra.mxu0 %v248
  %v250 = vand.u32 %v102, 4294901760
  %v251 = vsub.f32 %v102, %v250
  %v252 = vand.u32 %v251, 4294901760
  %v253 = vsub.f32 %v251, %v252
  %v254 = vand.u32 %v253, 4294901760
  %255 = vmatpush.xpose.msra.mxu0 %v254
  %v256 = vand.u32 %v99, 4294901760
  %v257 = vsub.f32 %v99, %v256
  %v258 = vand.u32 %v257, 4294901760
  %v259 = vsub.f32 %v257, %v258
  %v260 = vand.u32 %v259, 4294901760
  %261 = vmatpush.xpose.msra.mxu0 %v260
  %v262 = vand.u32 %v96, 4294901760
  %v263 = vsub.f32 %v96, %v262
  %v264 = vand.u32 %v263, 4294901760
  %v265 = vsub.f32 %v263, %v264
  %v266 = vand.u32 %v265, 4294901760
  %267 = vmatpush.xpose.msra.mxu0 %v266
  %v268 = vand.u32 %v93, 4294901760
  %v269 = vsub.f32 %v93, %v268
  %v270 = vand.u32 %v269, 4294901760
  %v271 = vsub.f32 %v269, %v270
  %v272 = vand.u32 %v271, 4294901760
  %273 = vmatpush.xpose.msra.mxu0 %v272
  %v274 = vand.u32 %v90, 4294901760
  %v275 = vsub.f32 %v90, %v274
  %v276 = vand.u32 %v275, 4294901760
  %v277 = vsub.f32 %v275, %v276
  %v278 = vand.u32 %v277, 4294901760
  %279 = vmatpush.xpose.msra.mxu0 %v278
  %v280 = vand.u32 %v87, 4294901760
  %v281 = vsub.f32 %v87, %v280
  %v282 = vand.u32 %v281, 4294901760
  %v283 = vsub.f32 %v281, %v282
  %v284 = vand.u32 %v283, 4294901760
  %285 = vmatpush.xpose.msra.mxu0 %v284
  %v286 = vand.u32 %v84, 4294901760
  %v287 = vsub.f32 %v84, %v286
  %v288 = vand.u32 %v287, 4294901760
  %v289 = vsub.f32 %v287, %v288
  %v290 = vand.u32 %v289, 4294901760
  %291 = vmatpush.xpose.msra.mxu0 %v290
  %v292 = vand.u32 %v72, 4294901760
  %293 = vmatmul.f32.gmra.mxu0 %v292
  %v294 = vpop.f32.mrf.mxu0
  %v295 = vadd.f32 %v170, %v294
  %v296 = vand.u32 %v75, 4294901760
  %297 = vmatmul.f32.gmra.mxu0 %v296
  %v298 = vpop.f32.mrf.mxu0
  %v299 = vadd.f32 %v178, %v298
  %v300 = vand.u32 %v78, 4294901760
  %301 = vmatmul.f32.gmra.mxu0 %v300
  %v302 = vpop.f32.mrf.mxu0
  %v303 = vadd.f32 %v186, %v302
  %v304 = vand.u32 %v81, 4294901760
  %305 = vmatmul.f32.gmra.mxu0 %v304
  %v306 = vpop.f32.mrf.mxu0
  %v307 = vadd.f32 %v194, %v306
  %308 = vdwg.mxu0
  %v309 = vand.u32 %v129, 4294901760
  %v310 = vsub.f32 %v129, %v309
  %311 = vmatpush.xpose.msra.mxu0 %v310
  %v312 = vand.u32 %v126, 4294901760
  %v313 = vsub.f32 %v126, %v312
  %314 = vmatpush.xpose.msra.mxu0 %v313
  %v315 = vand.u32 %v123, 4294901760
  %v316 = vsub.f32 %v123, %v315
  %317 = vmatpush.xpose.msra.mxu0 %v316
  %v318 = vand.u32 %v120, 4294901760
  %v319 = vsub.f32 %v120, %v318
  %320 = vmatpush.xpose.msra.mxu0 %v319
  %v321 = vand.u32 %v117, 4294901760
  %v322 = vsub.f32 %v117, %v321
  %323 = vmatpush.xpose.msra.mxu0 %v322
  %v324 = vand.u32 %v114, 4294901760
  %v325 = vsub.f32 %v114, %v324
  %326 = vmatpush.xpose.msra.mxu0 %v325
  %v327 = vand.u32 %v111, 4294901760
  %v328 = vsub.f32 %v111, %v327
  %329 = vmatpush.xpose.msra.mxu0 %v328
  %v330 = vand.u32 %v108, 4294901760
  %v331 = vsub.f32 %v108, %v330
  %332 = vmatpush.xpose.msra.mxu0 %v331
  %v333 = vand.u32 %v105, 4294901760
  %v334 = vsub.f32 %v105, %v333
  %335 = vmatpush.xpose.msra.mxu0 %v334
  %v336 = vand.u32 %v102, 4294901760
  %v337 = vsub.f32 %v102, %v336
  %338 = vmatpush.xpose.msra.mxu0 %v337
  %v339 = vand.u32 %v99, 4294901760
  %v340 = vsub.f32 %v99, %v339
  %341 = vmatpush.xpose.msra.mxu0 %v340
  %v342 = vand.u32 %v96, 4294901760
  %v343 = vsub.f32 %v96, %v342
  %344 = vmatpush.xpose.msra.mxu0 %v343
  %v345 = vand.u32 %v93, 4294901760
  %v346 = vsub.f32 %v93, %v345
  %347 = vmatpush.xpose.msra.mxu0 %v346
  %v348 = vand.u32 %v90, 4294901760
  %v349 = vsub.f32 %v90, %v348
  %350 = vmatpush.xpose.msra.mxu0 %v349
  %v351 = vand.u32 %v87, 4294901760
  %v352 = vsub.f32 %v87, %v351
  %353 = vmatpush.xpose.msra.mxu0 %v352
  %v354 = vand.u32 %v84, 4294901760
  %v355 = vsub.f32 %v84, %v354
  %356 = vmatpush.xpose.msra.mxu0 %v355
  %v357 = vand.u32 %v72, 4294901760
  %v358 = vsub.f32 %v72, %v357
  %359 = vmatmul.f32.gmra.mxu0 %v358
  %v360 = vpop.f32.mrf.mxu0
  %v361 = vadd.f32 %v295, %v360
  %v362 = vand.u32 %v75, 4294901760
  %v363 = vsub.f32 %v75, %v362
  %364 = vmatmul.f32.gmra.mxu0 %v363
  %v365 = vpop.f32.mrf.mxu0
  %v366 = vadd.f32 %v299, %v365
  %v367 = vand.u32 %v78, 4294901760
  %v368 = vsub.f32 %v78, %v367
  %369 = vmatmul.f32.gmra.mxu0 %v368
  %v370 = vpop.f32.mrf.mxu0
  %v371 = vadd.f32 %v303, %v370
  %v372 = vand.u32 %v81, 4294901760
  %v373 = vsub.f32 %v81, %v372
  %374 = vmatmul.f32.gmra.mxu0 %v373
  %v375 = vpop.f32.mrf.mxu0
  %v376 = vadd.f32 %v307, %v375
  %377 = vdwg.mxu0
  %v378 = vand.u32 %v129, 4294901760
  %379 = vmatpush.xpose.msra.mxu0 %v378
  %v380 = vand.u32 %v126, 4294901760
  %381 = vmatpush.xpose.msra.mxu0 %v380
  %v382 = vand.u32 %v123, 4294901760
  %383 = vmatpush.xpose.msra.mxu0 %v382
  %v384 = vand.u32 %v120, 4294901760
  %385 = vmatpush.xpose.msra.mxu0 %v384
  %v386 = vand.u32 %v117, 4294901760
  %387 = vmatpush.xpose.msra.mxu0 %v386
  %v388 = vand.u32 %v114, 4294901760
  %389 = vmatpush.xpose.msra.mxu0 %v388
  %v390 = vand.u32 %v111, 4294901760
  %391 = vmatpush.xpose.msra.mxu0 %v390
  %v392 = vand.u32 %v108, 4294901760
  %393 = vmatpush.xpose.msra.mxu0 %v392
  %v394 = vand.u32 %v105, 4294901760
  %395 = vmatpush.xpose.msra.mxu0 %v394
  %v396 = vand.u32 %v102, 4294901760
  %397 = vmatpush.xpose.msra.mxu0 %v396
  %v398 = vand.u32 %v99, 4294901760
  %399 = vmatpush.xpose.msra.mxu0 %v398
  %v400 = vand.u32 %v96, 4294901760
  %401 = vmatpush.xpose.msra.mxu0 %v400
  %v402 = vand.u32 %v93, 4294901760
  %403 = vmatpush.xpose.msra.mxu0 %v402
  %v404 = vand.u32 %v90, 4294901760
  %405 = vmatpush.xpose.msra.mxu0 %v404
  %v406 = vand.u32 %v87, 4294901760
  %407 = vmatpush.xpose.msra.mxu0 %v406
  %v408 = vand.u32 %v84, 4294901760
  %409 = vmatpush.xpose.msra.mxu0 %v408
  %v410 = vand.u32 %v72, 4294901760
  %v411 = vsub.f32 %v72, %v410
  %v412 = vand.u32 %v411, 4294901760
  %413 = vmatmul.f32.gmra.mxu0 %v412
  %v414 = vpop.f32.mrf.mxu0
  %v415 = vadd.f32 %v361, %v414
  %v416 = vand.u32 %v75, 4294901760
  %v417 = vsub.f32 %v75, %v416
  %v418 = vand.u32 %v417, 4294901760
  %419 = vmatmul.f32.gmra.mxu0 %v418
  %v420 = vpop.f32.mrf.mxu0
  %v421 = vadd.f32 %v366, %v420
  %v422 = vand.u32 %v78, 4294901760
  %v423 = vsub.f32 %v78, %v422
  %v424 = vand.u32 %v423, 4294901760
  %425 = vmatmul.f32.gmra.mxu0 %v424
  %v426 = vpop.f32.mrf.mxu0
  %v427 = vadd.f32 %v371, %v426
  %v428 = vand.u32 %v81, 4294901760
  %v429 = vsub.f32 %v81, %v428
  %v430 = vand.u32 %v429, 4294901760
  %431 = vmatmul.f32.gmra.mxu0 %v430
  %v432 = vpop.f32.mrf.mxu0
  %v433 = vadd.f32 %v376, %v432
  %434 = vdwg.mxu0
  %v435 = vand.u32 %v129, 4294901760
  %v436 = vsub.f32 %v129, %v435
  %v437 = vand.u32 %v436, 4294901760
  %438 = vmatpush.xpose.msra.mxu0 %v437
  %v439 = vand.u32 %v126, 4294901760
  %v440 = vsub.f32 %v126, %v439
  %v441 = vand.u32 %v440, 4294901760
  %442 = vmatpush.xpose.msra.mxu0 %v441
  %v443 = vand.u32 %v123, 4294901760
  %v444 = vsub.f32 %v123, %v443
  %v445 = vand.u32 %v444, 4294901760
  %446 = vmatpush.xpose.msra.mxu0 %v445
  %v447 = vand.u32 %v120, 4294901760
  %v448 = vsub.f32 %v120, %v447
  %v449 = vand.u32 %v448, 4294901760
  %450 = vmatpush.xpose.msra.mxu0 %v449
  %v451 = vand.u32 %v117, 4294901760
  %v452 = vsub.f32 %v117, %v451
  %v453 = vand.u32 %v452, 4294901760
  %454 = vmatpush.xpose.msra.mxu0 %v453
  %v455 = vand.u32 %v114, 4294901760
  %v456 = vsub.f32 %v114, %v455
  %v457 = vand.u32 %v456, 4294901760
  %458 = vmatpush.xpose.msra.mxu0 %v457
  %v459 = vand.u32 %v111, 4294901760
  %v460 = vsub.f32 %v111, %v459
  %v461 = vand.u32 %v460, 4294901760
  %462 = vmatpush.xpose.msra.mxu0 %v461
  %v463 = vand.u32 %v108, 4294901760
  %v464 = vsub.f32 %v108, %v463
  %v465 = vand.u32 %v464, 4294901760
  %466 = vmatpush.xpose.msra.mxu0 %v465
  %v467 = vand.u32 %v105, 4294901760
  %v468 = vsub.f32 %v105, %v467
  %v469 = vand.u32 %v468, 4294901760
  %470 = vmatpush.xpose.msra.mxu0 %v469
  %v471 = vand.u32 %v102, 4294901760
  %v472 = vsub.f32 %v102, %v471
  %v473 = vand.u32 %v472, 4294901760
  %474 = vmatpush.xpose.msra.mxu0 %v473
  %v475 = vand.u32 %v99, 4294901760
  %v476 = vsub.f32 %v99, %v475
  %v477 = vand.u32 %v476, 4294901760
  %478 = vmatpush.xpose.msra.mxu0 %v477
  %v479 = vand.u32 %v96, 4294901760
  %v480 = vsub.f32 %v96, %v479
  %v481 = vand.u32 %v480, 4294901760
  %482 = vmatpush.xpose.msra.mxu0 %v481
  %v483 = vand.u32 %v93, 4294901760
  %v484 = vsub.f32 %v93, %v483
  %v485 = vand.u32 %v484, 4294901760
  %486 = vmatpush.xpose.msra.mxu0 %v485
  %v487 = vand.u32 %v90, 4294901760
  %v488 = vsub.f32 %v90, %v487
  %v489 = vand.u32 %v488, 4294901760
  %490 = vmatpush.xpose.msra.mxu0 %v489
  %v491 = vand.u32 %v87, 4294901760
  %v492 = vsub.f32 %v87, %v491
  %v493 = vand.u32 %v492, 4294901760
  %494 = vmatpush.xpose.msra.mxu0 %v493
  %v495 = vand.u32 %v84, 4294901760
  %v496 = vsub.f32 %v84, %v495
  %v497 = vand.u32 %v496, 4294901760
  %498 = vmatpush.xpose.msra.mxu0 %v497
  %v499 = vand.u32 %v72, 4294901760
  %500 = vmatmul.f32.gmra.mxu0 %v499
  %v501 = vpop.f32.mrf.mxu0
  %v502 = vadd.f32 %v415, %v501
  %v503 = vand.u32 %v75, 4294901760
  %504 = vmatmul.f32.gmra.mxu0 %v503
  %v505 = vpop.f32.mrf.mxu0
  %v506 = vadd.f32 %v421, %v505
  %v507 = vand.u32 %v78, 4294901760
  %508 = vmatmul.f32.gmra.mxu0 %v507
  %v509 = vpop.f32.mrf.mxu0
  %v510 = vadd.f32 %v427, %v509
  %v511 = vand.u32 %v81, 4294901760
  %512 = vmatmul.f32.gmra.mxu0 %v511
  %v513 = vpop.f32.mrf.mxu0
  %v514 = vadd.f32 %v433, %v513
  %515 = vdwg.mxu0
  %v516 = vand.u32 %v129, 4294901760
  %517 = vmatpush.xpose.msra.mxu0 %v516
  %v518 = vand.u32 %v126, 4294901760
  %519 = vmatpush.xpose.msra.mxu0 %v518
  %v520 = vand.u32 %v123, 4294901760
  %521 = vmatpush.xpose.msra.mxu0 %v520
  %v522 = vand.u32 %v120, 4294901760
  %523 = vmatpush.xpose.msra.mxu0 %v522
  %v524 = vand.u32 %v117, 4294901760
  %525 = vmatpush.xpose.msra.mxu0 %v524
  %v526 = vand.u32 %v114, 4294901760
  %527 = vmatpush.xpose.msra.mxu0 %v526
  %v528 = vand.u32 %v111, 4294901760
  %529 = vmatpush.xpose.msra.mxu0 %v528
  %v530 = vand.u32 %v108, 4294901760
  %531 = vmatpush.xpose.msra.mxu0 %v530
  %v532 = vand.u32 %v105, 4294901760
  %533 = vmatpush.xpose.msra.mxu0 %v532
  %v534 = vand.u32 %v102, 4294901760
  %535 = vmatpush.xpose.msra.mxu0 %v534
  %v536 = vand.u32 %v99, 4294901760
  %537 = vmatpush.xpose.msra.mxu0 %v536
  %v538 = vand.u32 %v96, 4294901760
  %539 = vmatpush.xpose.msra.mxu0 %v538
  %v540 = vand.u32 %v93, 4294901760
  %541 = vmatpush.xpose.msra.mxu0 %v540
  %v542 = vand.u32 %v90, 4294901760
  %543 = vmatpush.xpose.msra.mxu0 %v542
  %v544 = vand.u32 %v87, 4294901760
  %545 = vmatpush.xpose.msra.mxu0 %v544
  %v546 = vand.u32 %v84, 4294901760
  %547 = vmatpush.xpose.msra.mxu0 %v546
  %v548 = vand.u32 %v72, 4294901760
  %549 = vmatmul.f32.gmra.mxu0 %v548
  %v550 = vpop.f32.mrf.mxu0
  %v551 = vadd.f32 %v502, %v550
  %v552 = vand.u32 %v75, 4294901760
  %553 = vmatmul.f32.gmra.mxu0 %v552
  %v554 = vpop.f32.mrf.mxu0
  %v555 = vadd.f32 %v506, %v554
  %v556 = vand.u32 %v78, 4294901760
  %557 = vmatmul.f32.gmra.mxu0 %v556
  %v558 = vpop.f32.mrf.mxu0
  %v559 = vadd.f32 %v510, %v558
  %v560 = vand.u32 %v81, 4294901760
  %561 = vmatmul.f32.gmra.mxu0 %v560
  %v562 = vpop.f32.mrf.mxu0
  %v563 = vadd.f32 %v514, %v562
  %564 = vdwg.mxu0
  %vm565 = vcmp.gt.f32.partialorder %v551, 0.0
  %vm566 = vcmp.gt.f32.partialorder %v555, 0.0
  %vm567 = vcmp.gt.f32.partialorder %v559, 0.0
  %vm568 = vcmp.gt.f32.partialorder %v563, 0.0
  %v569 = vmul.f32 %v551, 1.442695
  %v570 = vpow.pop %v569
  %v571 = vmul.f32 %v555, 1.442695
  %v572 = vpow.pop %v571
  %v573 = vmul.f32 %v559, 1.442695
  %v574 = vpow.pop %v573
  %v575 = vmul.f32 %v563, 1.442695
  %v576 = vpow.pop %v575
  %v577 = vmul.f32 %v570, 1.6732632
  %v578 = vmul.f32 %v572, 1.6732632
  %v579 = vmul.f32 %v574, 1.6732632
  %v580 = vmul.f32 %v576, 1.6732632
  %v581 = vsub.f32 %v577, 1.6732632
  %v582 = vsub.f32 %v578, 1.6732632
  %v583 = vsub.f32 %v579, 1.6732632
  %v584 = vsub.f32 %v580, 1.6732632
  %v585 = vsel %vm565, %v551, %v581
  %v586 = vsel %vm566, %v555, %v582
  %v587 = vsel %vm567, %v559, %v583
  %v588 = vsel %vm568, %v563, %v584
  %v589 = vld [vmem:[%s3] sm:$0xff]
  %v590 = vld [vmem:[%s3 + $0x8] sm:$0xff]
  %v591 = vld [vmem:[%s3 + $0x10] sm:$0xff]
  %v592 = vld [vmem:[%s3 + $0x18] sm:$0xff]
  %v593 = vld [vmem:[%s4] sm:$0xff]
  %v594 = vld [vmem:[%s4 + $0x8] sm:$0xff]
  %v595 = vld [vmem:[%s4 + $0x10] sm:$0xff]
  %v596 = vld [vmem:[%s4 + $0x18] sm:$0xff]
  %598 = vset.pattern.permute.xlu0 0
  %599 = vperm.xlu0 %598, %v593
  %v600 = vpop.permute.xlu0 %599
  %603 = vset.pattern.permute.xlu0 0
  %604 = vperm.xlu0 %603, %v594
  %v605 = vpop.permute.xlu0 %604
  %608 = vset.pattern.permute.xlu0 0
  %609 = vperm.xlu0 %608, %v595
  %v610 = vpop.permute.xlu0 %609
  %613 = vset.pattern.permute.xlu0 0
  %614 = vperm.xlu0 %613, %v596
  %v615 = vpop.permute.xlu0 %614
  %vm617 = vcmask 261120
  %v619 = vsel %vm617, %v589, 0
  %v622 = vsel %vm617, %v590, 0
  %v625 = vsel %vm617, %v591, 0
  %v628 = vsel %vm617, %v592, 0
  %630 = vmatpush.msra.mxu0 0.0
  %631 = vmatpush.msra.mxu0 0.0
  %632 = vmatpush.msra.mxu0 0.0
  %633 = vmatpush.msra.mxu0 0.0
  %634 = vmatpush.msra.mxu0 0.0
  %635 = vmatpush.msra.mxu0 0.0
  %636 = vmatpush.msra.mxu0 0.0
  %637 = vmatpush.msra.mxu0 0.0
  %638 = vmatpush.msra.mxu0 0.0
  %639 = vmatpush.msra.mxu0 0.0
  %640 = vmatpush.msra.mxu0 0.0
  %641 = vmatpush.msra.mxu0 0.0
  %v642 = vand.u32 %v588, 4294901760
  %643 = vmatpush.msra.mxu0 %v642
  %v644 = vand.u32 %v587, 4294901760
  %645 = vmatpush.msra.mxu0 %v644
  %v646 = vand.u32 %v586, 4294901760
  %647 = vmatpush.msra.mxu0 %v646
  %v648 = vand.u32 %v585, 4294901760
  %649 = vmatpush.msra.mxu0 %v648
  %v650 = vand.u32 %v619, 4294901760
  %v651 = vsub.f32 %v619, %v650
  %v652 = vand.u32 %v651, 4294901760
  %v653 = vsub.f32 %v651, %v652
  %v654 = vand.u32 %v653, 4294901760
  %655 = vmatmul.f32.gmra.mxu0 %v654
  %v656 = vpop.f32.mrf.mxu0
  %v657 = vadd.f32 %v600, %v656
  %v658 = vand.u32 %v622, 4294901760
  %v659 = vsub.f32 %v622, %v658
  %v660 = vand.u32 %v659, 4294901760
  %v661 = vsub.f32 %v659, %v660
  %v662 = vand.u32 %v661, 4294901760
  %663 = vmatmul.f32.gmra.mxu0 %v662
  %v664 = vpop.f32.mrf.mxu0
  %v665 = vadd.f32 %v605, %v664
  %v666 = vand.u32 %v625, 4294901760
  %v667 = vsub.f32 %v625, %v666
  %v668 = vand.u32 %v667, 4294901760
  %v669 = vsub.f32 %v667, %v668
  %v670 = vand.u32 %v669, 4294901760
  %671 = vmatmul.f32.gmra.mxu0 %v670
  %v672 = vpop.f32.mrf.mxu0
  %v673 = vadd.f32 %v610, %v672
  %v674 = vand.u32 %v628, 4294901760
  %v675 = vsub.f32 %v628, %v674
  %v676 = vand.u32 %v675, 4294901760
  %v677 = vsub.f32 %v675, %v676
  %v678 = vand.u32 %v677, 4294901760
  %679 = vmatmul.f32.gmra.mxu0 %v678
  %v680 = vpop.f32.mrf.mxu0
  %v681 = vadd.f32 %v615, %v680
  %682 = vdwg.mxu0
  %683 = vmatpush.msra.mxu0 0.0
  %684 = vmatpush.msra.mxu0 0.0
  %685 = vmatpush.msra.mxu0 0.0
  %686 = vmatpush.msra.mxu0 0.0
  %687 = vmatpush.msra.mxu0 0.0
  %688 = vmatpush.msra.mxu0 0.0
  %689 = vmatpush.msra.mxu0 0.0
  %690 = vmatpush.msra.mxu0 0.0
  %691 = vmatpush.msra.mxu0 0.0
  %692 = vmatpush.msra.mxu0 0.0
  %693 = vmatpush.msra.mxu0 0.0
  %694 = vmatpush.msra.mxu0 0.0
  %v695 = vand.u32 %v588, 4294901760
  %v696 = vsub.f32 %v588, %v695
  %v697 = vand.u32 %v696, 4294901760
  %v698 = vsub.f32 %v696, %v697
  %v699 = vand.u32 %v698, 4294901760
  %700 = vmatpush.msra.mxu0 %v699
  %v701 = vand.u32 %v587, 4294901760
  %v702 = vsub.f32 %v587, %v701
  %v703 = vand.u32 %v702, 4294901760
  %v704 = vsub.f32 %v702, %v703
  %v705 = vand.u32 %v704, 4294901760
  %706 = vmatpush.msra.mxu0 %v705
  %v707 = vand.u32 %v586, 4294901760
  %v708 = vsub.f32 %v586, %v707
  %v709 = vand.u32 %v708, 4294901760
  %v710 = vsub.f32 %v708, %v709
  %v711 = vand.u32 %v710, 4294901760
  %712 = vmatpush.msra.mxu0 %v711
  %v713 = vand.u32 %v585, 4294901760
  %v714 = vsub.f32 %v585, %v713
  %v715 = vand.u32 %v714, 4294901760
  %v716 = vsub.f32 %v714, %v715
  %v717 = vand.u32 %v716, 4294901760
  %718 = vmatpush.msra.mxu0 %v717
  %v719 = vand.u32 %v619, 4294901760
  %720 = vmatmul.f32.gmra.mxu0 %v719
  %v721 = vpop.f32.mrf.mxu0
  %v722 = vadd.f32 %v657, %v721
  %v723 = vand.u32 %v622, 4294901760
  %724 = vmatmul.f32.gmra.mxu0 %v723
  %v725 = vpop.f32.mrf.mxu0
  %v726 = vadd.f32 %v665, %v725
  %v727 = vand.u32 %v625, 4294901760
  %728 = vmatmul.f32.gmra.mxu0 %v727
  %v729 = vpop.f32.mrf.mxu0
  %v730 = vadd.f32 %v673, %v729
  %v731 = vand.u32 %v628, 4294901760
  %732 = vmatmul.f32.gmra.mxu0 %v731
  %v733 = vpop.f32.mrf.mxu0
  %v734 = vadd.f32 %v681, %v733
  %735 = vdwg.mxu0
  %736 = vmatpush.msra.mxu0 0.0
  %737 = vmatpush.msra.mxu0 0.0
  %738 = vmatpush.msra.mxu0 0.0
  %739 = vmatpush.msra.mxu0 0.0
  %740 = vmatpush.msra.mxu0 0.0
  %741 = vmatpush.msra.mxu0 0.0
  %742 = vmatpush.msra.mxu0 0.0
  %743 = vmatpush.msra.mxu0 0.0
  %744 = vmatpush.msra.mxu0 0.0
  %745 = vmatpush.msra.mxu0 0.0
  %746 = vmatpush.msra.mxu0 0.0
  %747 = vmatpush.msra.mxu0 0.0
  %v748 = vand.u32 %v588, 4294901760
  %v749 = vsub.f32 %v588, %v748
  %750 = vmatpush.msra.mxu0 %v749
  %v751 = vand.u32 %v587, 4294901760
  %v752 = vsub.f32 %v587, %v751
  %753 = vmatpush.msra.mxu0 %v752
  %v754 = vand.u32 %v586, 4294901760
  %v755 = vsub.f32 %v586, %v754
  %756 = vmatpush.msra.mxu0 %v755
  %v757 = vand.u32 %v585, 4294901760
  %v758 = vsub.f32 %v585, %v757
  %759 = vmatpush.msra.mxu0 %v758
  %v760 = vand.u32 %v619, 4294901760
  %v761 = vsub.f32 %v619, %v760
  %762 = vmatmul.f32.gmra.mxu0 %v761
  %v763 = vpop.f32.mrf.mxu0
  %v764 = vadd.f32 %v722, %v763
  %v765 = vand.u32 %v622, 4294901760
  %v766 = vsub.f32 %v622, %v765
  %767 = vmatmul.f32.gmra.mxu0 %v766
  %v768 = vpop.f32.mrf.mxu0
  %v769 = vadd.f32 %v726, %v768
  %v770 = vand.u32 %v625, 4294901760
  %v771 = vsub.f32 %v625, %v770
  %772 = vmatmul.f32.gmra.mxu0 %v771
  %v773 = vpop.f32.mrf.mxu0
  %v774 = vadd.f32 %v730, %v773
  %v775 = vand.u32 %v628, 4294901760
  %v776 = vsub.f32 %v628, %v775
  %777 = vmatmul.f32.gmra.mxu0 %v776
  %v778 = vpop.f32.mrf.mxu0
  %v779 = vadd.f32 %v734, %v778
  %780 = vdwg.mxu0
  %781 = vmatpush.msra.mxu0 0.0
  %782 = vmatpush.msra.mxu0 0.0
  %783 = vmatpush.msra.mxu0 0.0
  %784 = vmatpush.msra.mxu0 0.0
  %785 = vmatpush.msra.mxu0 0.0
  %786 = vmatpush.msra.mxu0 0.0
  %787 = vmatpush.msra.mxu0 0.0
  %788 = vmatpush.msra.mxu0 0.0
  %789 = vmatpush.msra.mxu0 0.0
  %790 = vmatpush.msra.mxu0 0.0
  %791 = vmatpush.msra.mxu0 0.0
  %792 = vmatpush.msra.mxu0 0.0
  %v793 = vand.u32 %v588, 4294901760
  %794 = vmatpush.msra.mxu0 %v793
  %v795 = vand.u32 %v587, 4294901760
  %796 = vmatpush.msra.mxu0 %v795
  %v797 = vand.u32 %v586, 4294901760
  %798 = vmatpush.msra.mxu0 %v797
  %v799 = vand.u32 %v585, 4294901760
  %800 = vmatpush.msra.mxu0 %v799
  %v801 = vand.u32 %v619, 4294901760
  %v802 = vsub.f32 %v619, %v801
  %v803 = vand.u32 %v802, 4294901760
  %804 = vmatmul.f32.gmra.mxu0 %v803
  %v805 = vpop.f32.mrf.mxu0
  %v806 = vadd.f32 %v764, %v805
  %v807 = vand.u32 %v622, 4294901760
  %v808 = vsub.f32 %v622, %v807
  %v809 = vand.u32 %v808, 4294901760
  %810 = vmatmul.f32.gmra.mxu0 %v809
  %v811 = vpop.f32.mrf.mxu0
  %v812 = vadd.f32 %v769, %v811
  %v813 = vand.u32 %v625, 4294901760
  %v814 = vsub.f32 %v625, %v813
  %v815 = vand.u32 %v814, 4294901760
  %816 = vmatmul.f32.gmra.mxu0 %v815
  %v817 = vpop.f32.mrf.mxu0
  %v818 = vadd.f32 %v774, %v817
  %v819 = vand.u32 %v628, 4294901760
  %v820 = vsub.f32 %v628, %v819
  %v821 = vand.u32 %v820, 4294901760
  %822 = vmatmul.f32.gmra.mxu0 %v821
  %v823 = vpop.f32.mrf.mxu0
  %v824 = vadd.f32 %v779, %v823
  %825 = vdwg.mxu0
  %826 = vmatpush.msra.mxu0 0.0
  %827 = vmatpush.msra.mxu0 0.0
  %828 = vmatpush.msra.mxu0 0.0
  %829 = vmatpush.msra.mxu0 0.0
  %830 = vmatpush.msra.mxu0 0.0
  %831 = vmatpush.msra.mxu0 0.0
  %832 = vmatpush.msra.mxu0 0.0
  %833 = vmatpush.msra.mxu0 0.0
  %834 = vmatpush.msra.mxu0 0.0
  %835 = vmatpush.msra.mxu0 0.0
  %836 = vmatpush.msra.mxu0 0.0
  %837 = vmatpush.msra.mxu0 0.0
  %v838 = vand.u32 %v588, 4294901760
  %v839 = vsub.f32 %v588, %v838
  %v840 = vand.u32 %v839, 4294901760
  %841 = vmatpush.msra.mxu0 %v840
  %v842 = vand.u32 %v587, 4294901760
  %v843 = vsub.f32 %v587, %v842
  %v844 = vand.u32 %v843, 4294901760
  %845 = vmatpush.msra.mxu0 %v844
  %v846 = vand.u32 %v586, 4294901760
  %v847 = vsub.f32 %v586, %v846
  %v848 = vand.u32 %v847, 4294901760
  %849 = vmatpush.msra.mxu0 %v848
  %v850 = vand.u32 %v585, 4294901760
  %v851 = vsub.f32 %v585, %v850
  %v852 = vand.u32 %v851, 4294901760
  %853 = vmatpush.msra.mxu0 %v852
  %v854 = vand.u32 %v619, 4294901760
  %855 = vmatmul.f32.gmra.mxu0 %v854
  %v856 = vpop.f32.mrf.mxu0
  %v857 = vadd.f32 %v806, %v856
  %v858 = vand.u32 %v622, 4294901760
  %859 = vmatmul.f32.gmra.mxu0 %v858
  %v860 = vpop.f32.mrf.mxu0
  %v861 = vadd.f32 %v812, %v860
  %v862 = vand.u32 %v625, 4294901760
  %863 = vmatmul.f32.gmra.mxu0 %v862
  %v864 = vpop.f32.mrf.mxu0
  %v865 = vadd.f32 %v818, %v864
  %v866 = vand.u32 %v628, 4294901760
  %867 = vmatmul.f32.gmra.mxu0 %v866
  %v868 = vpop.f32.mrf.mxu0
  %v869 = vadd.f32 %v824, %v868
  %870 = vdwg.mxu0
  %871 = vmatpush.msra.mxu0 0.0
  %872 = vmatpush.msra.mxu0 0.0
  %873 = vmatpush.msra.mxu0 0.0
  %874 = vmatpush.msra.mxu0 0.0
  %875 = vmatpush.msra.mxu0 0.0
  %876 = vmatpush.msra.mxu0 0.0
  %877 = vmatpush.msra.mxu0 0.0
  %878 = vmatpush.msra.mxu0 0.0
  %879 = vmatpush.msra.mxu0 0.0
  %880 = vmatpush.msra.mxu0 0.0
  %881 = vmatpush.msra.mxu0 0.0
  %882 = vmatpush.msra.mxu0 0.0
  %v883 = vand.u32 %v588, 4294901760
  %884 = vmatpush.msra.mxu0 %v883
  %v885 = vand.u32 %v587, 4294901760
  %886 = vmatpush.msra.mxu0 %v885
  %v887 = vand.u32 %v586, 4294901760
  %888 = vmatpush.msra.mxu0 %v887
  %v889 = vand.u32 %v585, 4294901760
  %890 = vmatpush.msra.mxu0 %v889
  %v891 = vand.u32 %v619, 4294901760
  %892 = vmatmul.f32.gmra.mxu0 %v891
  %v893 = vpop.f32.mrf.mxu0
  %v894 = vadd.f32 %v857, %v893
  %v895 = vand.u32 %v622, 4294901760
  %896 = vmatmul.f32.gmra.mxu0 %v895
  %v897 = vpop.f32.mrf.mxu0
  %v898 = vadd.f32 %v861, %v897
  %v899 = vand.u32 %v625, 4294901760
  %900 = vmatmul.f32.gmra.mxu0 %v899
  %v901 = vpop.f32.mrf.mxu0
  %v902 = vadd.f32 %v865, %v901
  %v903 = vand.u32 %v628, 4294901760
  %904 = vmatmul.f32.gmra.mxu0 %v903
  %v905 = vpop.f32.mrf.mxu0
  %v906 = vadd.f32 %v869, %v905
  %907 = vdwg.mxu0
  %vm908 = vcmp.gt.f32.partialorder %v894, 0.0
  %vm909 = vcmp.gt.f32.partialorder %v898, 0.0
  %vm910 = vcmp.gt.f32.partialorder %v902, 0.0
  %vm911 = vcmp.gt.f32.partialorder %v906, 0.0
  %v912 = vmul.f32 %v894, 1.442695
  %v913 = vpow.pop %v912
  %v914 = vmul.f32 %v898, 1.442695
  %v915 = vpow.pop %v914
  %v916 = vmul.f32 %v902, 1.442695
  %v917 = vpow.pop %v916
  %v918 = vmul.f32 %v906, 1.442695
  %v919 = vpow.pop %v918
  %v920 = vmul.f32 %v913, 1.6732632
  %v921 = vmul.f32 %v915, 1.6732632
  %v922 = vmul.f32 %v917, 1.6732632
  %v923 = vmul.f32 %v919, 1.6732632
  %v924 = vsub.f32 %v920, 1.6732632
  %v925 = vsub.f32 %v921, 1.6732632
  %v926 = vsub.f32 %v922, 1.6732632
  %v927 = vsub.f32 %v923, 1.6732632
  %v928 = vsel %vm908, %v894, %v924
  %v929 = vsel %vm909, %v898, %v925
  %v930 = vsel %vm910, %v902, %v926
  %v931 = vsel %vm911, %v906, %v927
  %v932 = vld [vmem:[%s5] sm:$0xff]
  %v933 = vld [vmem:[%s5 + $0x8] sm:$0xff]
  %v934 = vld [vmem:[%s5 + $0x10] sm:$0xff]
  %v935 = vld [vmem:[%s5 + $0x18] sm:$0xff]
  %v936 = vld [vmem:[%s6] sm:$0x1]
  %v938 = vperm.slane %v936, 0
  %940 = vxpose.xlu0.b32.start [1/16] %v928, 128
  %941 = vxpose.xlu0.b32.cont [2/16] %v929, 128
  %942 = vxpose.xlu0.b32.cont [3/16] %v930, 128
  %943 = vxpose.xlu0.b32.cont [4/16] %v931, 128
  %944 = vxpose.xlu0.b32.cont [5/16] 0.0, 128
  %945 = vxpose.xlu0.b32.cont [6/16] 0.0, 128
  %946 = vxpose.xlu0.b32.cont [7/16] 0.0, 128
  %947 = vxpose.xlu0.b32.cont [8/16] 0.0, 128
  %948 = vxpose.xlu0.b32.cont [9/16] 0.0, 128
  %949 = vxpose.xlu0.b32.cont [10/16] 0.0, 128
  %950 = vxpose.xlu0.b32.cont [11/16] 0.0, 128
  %951 = vxpose.xlu0.b32.cont [12/16] 0.0, 128
  %952 = vxpose.xlu0.b32.cont [13/16] 0.0, 128
  %953 = vxpose.xlu0.b32.cont [14/16] 0.0, 128
  %954 = vxpose.xlu0.b32.cont [15/16] 0.0, 128
  %955 = vxpose.xlu0.b32.end [16/16] 0.0, 128
  %v956 = vpop.trf.xlu0
  %v957 = vpop.trf.xlu0
  %v958 = vpop.trf.xlu0
  %v959 = vpop.trf.xlu0
  %v960 = vpop.trf.xlu0
  %v961 = vpop.trf.xlu0
  %v962 = vpop.trf.xlu0
  %v963 = vpop.trf.xlu0
  %v964 = vpop.trf.xlu0
  %v965 = vpop.trf.xlu0
  %v966 = vpop.trf.xlu0
  %v967 = vpop.trf.xlu0
  %v968 = vpop.trf.xlu0
  %v969 = vpop.trf.xlu0
  %v970 = vpop.trf.xlu0
  %v971 = vpop.trf.xlu0
  %v973 = vsel %vm617, %v956, 0
  %v976 = vsel %vm617, %v957, 0
  %v979 = vsel %vm617, %v958, 0
  %v982 = vsel %vm617, %v959, 0
  %v985 = vsel %vm617, %v960, 0
  %v988 = vsel %vm617, %v961, 0
  %v991 = vsel %vm617, %v962, 0
  %v994 = vsel %vm617, %v963, 0
  %v997 = vsel %vm617, %v964, 0
  %v1000 = vsel %vm617, %v965, 0
  %v1003 = vsel %vm617, %v966, 0
  %v1006 = vsel %vm617, %v967, 0
  %v1009 = vsel %vm617, %v968, 0
  %v1012 = vsel %vm617, %v969, 0
  %v1015 = vsel %vm617, %v970, 0
  %v1018 = vsel %vm617, %v971, 0
  %1020 = vmatpush.msra.mxu0 0.0
  %1021 = vmatpush.msra.mxu0 0.0
  %1022 = vmatpush.msra.mxu0 0.0
  %1023 = vmatpush.msra.mxu0 0.0
  %1024 = vmatpush.msra.mxu0 0.0
  %1025 = vmatpush.msra.mxu0 0.0
  %1026 = vmatpush.msra.mxu0 0.0
  %1027 = vmatpush.msra.mxu0 0.0
  %1028 = vmatpush.msra.mxu0 0.0
  %1029 = vmatpush.msra.mxu0 0.0
  %1030 = vmatpush.msra.mxu0 0.0
  %1031 = vmatpush.msra.mxu0 0.0
  %v1032 = vand.u32 %v935, 4294901760
  %1033 = vmatpush.msra.mxu0 %v1032
  %v1034 = vand.u32 %v934, 4294901760
  %1035 = vmatpush.msra.mxu0 %v1034
  %v1036 = vand.u32 %v933, 4294901760
  %1037 = vmatpush.msra.mxu0 %v1036
  %v1038 = vand.u32 %v932, 4294901760
  %1039 = vmatpush.msra.mxu0 %v1038
  %v1040 = vand.u32 %v973, 4294901760
  %v1041 = vsub.f32 %v973, %v1040
  %v1042 = vand.u32 %v1041, 4294901760
  %v1043 = vsub.f32 %v1041, %v1042
  %v1044 = vand.u32 %v1043, 4294901760
  %1045 = vmatmul.f32.gmra.mxu0 %v1044
  %v1046 = vpop.f32.mrf.mxu0
  %v1047 = vadd.f32 %v938, %v1046
  %v1048 = vand.u32 %v976, 4294901760
  %v1049 = vsub.f32 %v976, %v1048
  %v1050 = vand.u32 %v1049, 4294901760
  %v1051 = vsub.f32 %v1049, %v1050
  %v1052 = vand.u32 %v1051, 4294901760
  %1053 = vmatmul.f32.gmra.mxu0 %v1052
  %v1054 = vpop.f32.mrf.mxu0
  %v1055 = vadd.f32 %v938, %v1054
  %v1056 = vand.u32 %v979, 4294901760
  %v1057 = vsub.f32 %v979, %v1056
  %v1058 = vand.u32 %v1057, 4294901760
  %v1059 = vsub.f32 %v1057, %v1058
  %v1060 = vand.u32 %v1059, 4294901760
  %1061 = vmatmul.f32.gmra.mxu0 %v1060
  %v1062 = vpop.f32.mrf.mxu0
  %v1063 = vadd.f32 %v938, %v1062
  %v1064 = vand.u32 %v982, 4294901760
  %v1065 = vsub.f32 %v982, %v1064
  %v1066 = vand.u32 %v1065, 4294901760
  %v1067 = vsub.f32 %v1065, %v1066
  %v1068 = vand.u32 %v1067, 4294901760
  %1069 = vmatmul.f32.gmra.mxu0 %v1068
  %v1070 = vpop.f32.mrf.mxu0
  %v1071 = vadd.f32 %v938, %v1070
  %v1072 = vand.u32 %v985, 4294901760
  %v1073 = vsub.f32 %v985, %v1072
  %v1074 = vand.u32 %v1073, 4294901760
  %v1075 = vsub.f32 %v1073, %v1074
  %v1076 = vand.u32 %v1075, 4294901760
  %1077 = vmatmul.f32.gmra.mxu0 %v1076
  %v1078 = vpop.f32.mrf.mxu0
  %v1079 = vadd.f32 %v938, %v1078
  %v1080 = vand.u32 %v988, 4294901760
  %v1081 = vsub.f32 %v988, %v1080
  %v1082 = vand.u32 %v1081, 4294901760
  %v1083 = vsub.f32 %v1081, %v1082
  %v1084 = vand.u32 %v1083, 4294901760
  %1085 = vmatmul.f32.gmra.mxu0 %v1084
  %v1086 = vpop.f32.mrf.mxu0
  %v1087 = vadd.f32 %v938, %v1086
  %v1088 = vand.u32 %v991, 4294901760
  %v1089 = vsub.f32 %v991, %v1088
  %v1090 = vand.u32 %v1089, 4294901760
  %v1091 = vsub.f32 %v1089, %v1090
  %v1092 = vand.u32 %v1091, 4294901760
  %1093 = vmatmul.f32.gmra.mxu0 %v1092
  %v1094 = vpop.f32.mrf.mxu0
  %v1095 = vadd.f32 %v938, %v1094
  %v1096 = vand.u32 %v994, 4294901760
  %v1097 = vsub.f32 %v994, %v1096
  %v1098 = vand.u32 %v1097, 4294901760
  %v1099 = vsub.f32 %v1097, %v1098
  %v1100 = vand.u32 %v1099, 4294901760
  %1101 = vmatmul.f32.gmra.mxu0 %v1100
  %v1102 = vpop.f32.mrf.mxu0
  %v1103 = vadd.f32 %v938, %v1102
  %v1104 = vand.u32 %v997, 4294901760
  %v1105 = vsub.f32 %v997, %v1104
  %v1106 = vand.u32 %v1105, 4294901760
  %v1107 = vsub.f32 %v1105, %v1106
  %v1108 = vand.u32 %v1107, 4294901760
  %1109 = vmatmul.f32.gmra.mxu0 %v1108
  %v1110 = vpop.f32.mrf.mxu0
  %v1111 = vadd.f32 %v938, %v1110
  %v1112 = vand.u32 %v1000, 4294901760
  %v1113 = vsub.f32 %v1000, %v1112
  %v1114 = vand.u32 %v1113, 4294901760
  %v1115 = vsub.f32 %v1113, %v1114
  %v1116 = vand.u32 %v1115, 4294901760
  %1117 = vmatmul.f32.gmra.mxu0 %v1116
  %v1118 = vpop.f32.mrf.mxu0
  %v1119 = vadd.f32 %v938, %v1118
  %v1120 = vand.u32 %v1003, 4294901760
  %v1121 = vsub.f32 %v1003, %v1120
  %v1122 = vand.u32 %v1121, 4294901760
  %v1123 = vsub.f32 %v1121, %v1122
  %v1124 = vand.u32 %v1123, 4294901760
  %1125 = vmatmul.f32.gmra.mxu0 %v1124
  %v1126 = vpop.f32.mrf.mxu0
  %v1127 = vadd.f32 %v938, %v1126
  %v1128 = vand.u32 %v1006, 4294901760
  %v1129 = vsub.f32 %v1006, %v1128
  %v1130 = vand.u32 %v1129, 4294901760
  %v1131 = vsub.f32 %v1129, %v1130
  %v1132 = vand.u32 %v1131, 4294901760
  %1133 = vmatmul.f32.gmra.mxu0 %v1132
  %v1134 = vpop.f32.mrf.mxu0
  %v1135 = vadd.f32 %v938, %v1134
  %v1136 = vand.u32 %v1009, 4294901760
  %v1137 = vsub.f32 %v1009, %v1136
  %v1138 = vand.u32 %v1137, 4294901760
  %v1139 = vsub.f32 %v1137, %v1138
  %v1140 = vand.u32 %v1139, 4294901760
  %1141 = vmatmul.f32.gmra.mxu0 %v1140
  %v1142 = vpop.f32.mrf.mxu0
  %v1143 = vadd.f32 %v938, %v1142
  %v1144 = vand.u32 %v1012, 4294901760
  %v1145 = vsub.f32 %v1012, %v1144
  %v1146 = vand.u32 %v1145, 4294901760
  %v1147 = vsub.f32 %v1145, %v1146
  %v1148 = vand.u32 %v1147, 4294901760
  %1149 = vmatmul.f32.gmra.mxu0 %v1148
  %v1150 = vpop.f32.mrf.mxu0
  %v1151 = vadd.f32 %v938, %v1150
  %v1152 = vand.u32 %v1015, 4294901760
  %v1153 = vsub.f32 %v1015, %v1152
  %v1154 = vand.u32 %v1153, 4294901760
  %v1155 = vsub.f32 %v1153, %v1154
  %v1156 = vand.u32 %v1155, 4294901760
  %1157 = vmatmul.f32.gmra.mxu0 %v1156
  %v1158 = vpop.f32.mrf.mxu0
  %v1159 = vadd.f32 %v938, %v1158
  %v1160 = vand.u32 %v1018, 4294901760
  %v1161 = vsub.f32 %v1018, %v1160
  %v1162 = vand.u32 %v1161, 4294901760
  %v1163 = vsub.f32 %v1161, %v1162
  %v1164 = vand.u32 %v1163, 4294901760
  %1165 = vmatmul.f32.gmra.mxu0 %v1164
  %v1166 = vpop.f32.mrf.mxu0
  %v1167 = vadd.f32 %v938, %v1166
  %1168 = vdwg.mxu0
  %1169 = vmatpush.msra.mxu0 0.0
  %1170 = vmatpush.msra.mxu0 0.0
  %1171 = vmatpush.msra.mxu0 0.0
  %1172 = vmatpush.msra.mxu0 0.0
  %1173 = vmatpush.msra.mxu0 0.0
  %1174 = vmatpush.msra.mxu0 0.0
  %1175 = vmatpush.msra.mxu0 0.0
  %1176 = vmatpush.msra.mxu0 0.0
  %1177 = vmatpush.msra.mxu0 0.0
  %1178 = vmatpush.msra.mxu0 0.0
  %1179 = vmatpush.msra.mxu0 0.0
  %1180 = vmatpush.msra.mxu0 0.0
  %v1181 = vand.u32 %v935, 4294901760
  %v1182 = vsub.f32 %v935, %v1181
  %v1183 = vand.u32 %v1182, 4294901760
  %v1184 = vsub.f32 %v1182, %v1183
  %v1185 = vand.u32 %v1184, 4294901760
  %1186 = vmatpush.msra.mxu0 %v1185
  %v1187 = vand.u32 %v934, 4294901760
  %v1188 = vsub.f32 %v934, %v1187
  %v1189 = vand.u32 %v1188, 4294901760
  %v1190 = vsub.f32 %v1188, %v1189
  %v1191 = vand.u32 %v1190, 4294901760
  %1192 = vmatpush.msra.mxu0 %v1191
  %v1193 = vand.u32 %v933, 4294901760
  %v1194 = vsub.f32 %v933, %v1193
  %v1195 = vand.u32 %v1194, 4294901760
  %v1196 = vsub.f32 %v1194, %v1195
  %v1197 = vand.u32 %v1196, 4294901760
  %1198 = vmatpush.msra.mxu0 %v1197
  %v1199 = vand.u32 %v932, 4294901760
  %v1200 = vsub.f32 %v932, %v1199
  %v1201 = vand.u32 %v1200, 4294901760
  %v1202 = vsub.f32 %v1200, %v1201
  %v1203 = vand.u32 %v1202, 4294901760
  %1204 = vmatpush.msra.mxu0 %v1203
  %v1205 = vand.u32 %v973, 4294901760
  %1206 = vmatmul.f32.gmra.mxu0 %v1205
  %v1207 = vpop.f32.mrf.mxu0
  %v1208 = vadd.f32 %v1047, %v1207
  %v1209 = vand.u32 %v976, 4294901760
  %1210 = vmatmul.f32.gmra.mxu0 %v1209
  %v1211 = vpop.f32.mrf.mxu0
  %v1212 = vadd.f32 %v1055, %v1211
  %v1213 = vand.u32 %v979, 4294901760
  %1214 = vmatmul.f32.gmra.mxu0 %v1213
  %v1215 = vpop.f32.mrf.mxu0
  %v1216 = vadd.f32 %v1063, %v1215
  %v1217 = vand.u32 %v982, 4294901760
  %1218 = vmatmul.f32.gmra.mxu0 %v1217
  %v1219 = vpop.f32.mrf.mxu0
  %v1220 = vadd.f32 %v1071, %v1219
  %v1221 = vand.u32 %v985, 4294901760
  %1222 = vmatmul.f32.gmra.mxu0 %v1221
  %v1223 = vpop.f32.mrf.mxu0
  %v1224 = vadd.f32 %v1079, %v1223
  %v1225 = vand.u32 %v988, 4294901760
  %1226 = vmatmul.f32.gmra.mxu0 %v1225
  %v1227 = vpop.f32.mrf.mxu0
  %v1228 = vadd.f32 %v1087, %v1227
  %v1229 = vand.u32 %v991, 4294901760
  %1230 = vmatmul.f32.gmra.mxu0 %v1229
  %v1231 = vpop.f32.mrf.mxu0
  %v1232 = vadd.f32 %v1095, %v1231
  %v1233 = vand.u32 %v994, 4294901760
  %1234 = vmatmul.f32.gmra.mxu0 %v1233
  %v1235 = vpop.f32.mrf.mxu0
  %v1236 = vadd.f32 %v1103, %v1235
  %v1237 = vand.u32 %v997, 4294901760
  %1238 = vmatmul.f32.gmra.mxu0 %v1237
  %v1239 = vpop.f32.mrf.mxu0
  %v1240 = vadd.f32 %v1111, %v1239
  %v1241 = vand.u32 %v1000, 4294901760
  %1242 = vmatmul.f32.gmra.mxu0 %v1241
  %v1243 = vpop.f32.mrf.mxu0
  %v1244 = vadd.f32 %v1119, %v1243
  %v1245 = vand.u32 %v1003, 4294901760
  %1246 = vmatmul.f32.gmra.mxu0 %v1245
  %v1247 = vpop.f32.mrf.mxu0
  %v1248 = vadd.f32 %v1127, %v1247
  %v1249 = vand.u32 %v1006, 4294901760
  %1250 = vmatmul.f32.gmra.mxu0 %v1249
  %v1251 = vpop.f32.mrf.mxu0
  %v1252 = vadd.f32 %v1135, %v1251
  %v1253 = vand.u32 %v1009, 4294901760
  %1254 = vmatmul.f32.gmra.mxu0 %v1253
  %v1255 = vpop.f32.mrf.mxu0
  %v1256 = vadd.f32 %v1143, %v1255
  %v1257 = vand.u32 %v1012, 4294901760
  %1258 = vmatmul.f32.gmra.mxu0 %v1257
  %v1259 = vpop.f32.mrf.mxu0
  %v1260 = vadd.f32 %v1151, %v1259
  %v1261 = vand.u32 %v1015, 4294901760
  %1262 = vmatmul.f32.gmra.mxu0 %v1261
  %v1263 = vpop.f32.mrf.mxu0
  %v1264 = vadd.f32 %v1159, %v1263
  %v1265 = vand.u32 %v1018, 4294901760
  %1266 = vmatmul.f32.gmra.mxu0 %v1265
  %v1267 = vpop.f32.mrf.mxu0
  %v1268 = vadd.f32 %v1167, %v1267
  %1269 = vdwg.mxu0
  %1270 = vmatpush.msra.mxu0 0.0
  %1271 = vmatpush.msra.mxu0 0.0
  %1272 = vmatpush.msra.mxu0 0.0
  %1273 = vmatpush.msra.mxu0 0.0
  %1274 = vmatpush.msra.mxu0 0.0
  %1275 = vmatpush.msra.mxu0 0.0
  %1276 = vmatpush.msra.mxu0 0.0
  %1277 = vmatpush.msra.mxu0 0.0
  %1278 = vmatpush.msra.mxu0 0.0
  %1279 = vmatpush.msra.mxu0 0.0
  %1280 = vmatpush.msra.mxu0 0.0
  %1281 = vmatpush.msra.mxu0 0.0
  %v1282 = vand.u32 %v935, 4294901760
  %v1283 = vsub.f32 %v935, %v1282
  %1284 = vmatpush.msra.mxu0 %v1283
  %v1285 = vand.u32 %v934, 4294901760
  %v1286 = vsub.f32 %v934, %v1285
  %1287 = vmatpush.msra.mxu0 %v1286
  %v1288 = vand.u32 %v933, 4294901760
  %v1289 = vsub.f32 %v933, %v1288
  %1290 = vmatpush.msra.mxu0 %v1289
  %v1291 = vand.u32 %v932, 4294901760
  %v1292 = vsub.f32 %v932, %v1291
  %1293 = vmatpush.msra.mxu0 %v1292
  %v1294 = vand.u32 %v973, 4294901760
  %v1295 = vsub.f32 %v973, %v1294
  %1296 = vmatmul.f32.gmra.mxu0 %v1295
  %v1297 = vpop.f32.mrf.mxu0
  %v1298 = vadd.f32 %v1208, %v1297
  %v1299 = vand.u32 %v976, 4294901760
  %v1300 = vsub.f32 %v976, %v1299
  %1301 = vmatmul.f32.gmra.mxu0 %v1300
  %v1302 = vpop.f32.mrf.mxu0
  %v1303 = vadd.f32 %v1212, %v1302
  %v1304 = vand.u32 %v979, 4294901760
  %v1305 = vsub.f32 %v979, %v1304
  %1306 = vmatmul.f32.gmra.mxu0 %v1305
  %v1307 = vpop.f32.mrf.mxu0
  %v1308 = vadd.f32 %v1216, %v1307
  %v1309 = vand.u32 %v982, 4294901760
  %v1310 = vsub.f32 %v982, %v1309
  %1311 = vmatmul.f32.gmra.mxu0 %v1310
  %v1312 = vpop.f32.mrf.mxu0
  %v1313 = vadd.f32 %v1220, %v1312
  %v1314 = vand.u32 %v985, 4294901760
  %v1315 = vsub.f32 %v985, %v1314
  %1316 = vmatmul.f32.gmra.mxu0 %v1315
  %v1317 = vpop.f32.mrf.mxu0
  %v1318 = vadd.f32 %v1224, %v1317
  %v1319 = vand.u32 %v988, 4294901760
  %v1320 = vsub.f32 %v988, %v1319
  %1321 = vmatmul.f32.gmra.mxu0 %v1320
  %v1322 = vpop.f32.mrf.mxu0
  %v1323 = vadd.f32 %v1228, %v1322
  %v1324 = vand.u32 %v991, 4294901760
  %v1325 = vsub.f32 %v991, %v1324
  %1326 = vmatmul.f32.gmra.mxu0 %v1325
  %v1327 = vpop.f32.mrf.mxu0
  %v1328 = vadd.f32 %v1232, %v1327
  %v1329 = vand.u32 %v994, 4294901760
  %v1330 = vsub.f32 %v994, %v1329
  %1331 = vmatmul.f32.gmra.mxu0 %v1330
  %v1332 = vpop.f32.mrf.mxu0
  %v1333 = vadd.f32 %v1236, %v1332
  %v1334 = vand.u32 %v997, 4294901760
  %v1335 = vsub.f32 %v997, %v1334
  %1336 = vmatmul.f32.gmra.mxu0 %v1335
  %v1337 = vpop.f32.mrf.mxu0
  %v1338 = vadd.f32 %v1240, %v1337
  %v1339 = vand.u32 %v1000, 4294901760
  %v1340 = vsub.f32 %v1000, %v1339
  %1341 = vmatmul.f32.gmra.mxu0 %v1340
  %v1342 = vpop.f32.mrf.mxu0
  %v1343 = vadd.f32 %v1244, %v1342
  %v1344 = vand.u32 %v1003, 4294901760
  %v1345 = vsub.f32 %v1003, %v1344
  %1346 = vmatmul.f32.gmra.mxu0 %v1345
  %v1347 = vpop.f32.mrf.mxu0
  %v1348 = vadd.f32 %v1248, %v1347
  %v1349 = vand.u32 %v1006, 4294901760
  %v1350 = vsub.f32 %v1006, %v1349
  %1351 = vmatmul.f32.gmra.mxu0 %v1350
  %v1352 = vpop.f32.mrf.mxu0
  %v1353 = vadd.f32 %v1252, %v1352
  %v1354 = vand.u32 %v1009, 4294901760
  %v1355 = vsub.f32 %v1009, %v1354
  %1356 = vmatmul.f32.gmra.mxu0 %v1355
  %v1357 = vpop.f32.mrf.mxu0
  %v1358 = vadd.f32 %v1256, %v1357
  %v1359 = vand.u32 %v1012, 4294901760
  %v1360 = vsub.f32 %v1012, %v1359
  %1361 = vmatmul.f32.gmra.mxu0 %v1360
  %v1362 = vpop.f32.mrf.mxu0
  %v1363 = vadd.f32 %v1260, %v1362
  %v1364 = vand.u32 %v1015, 4294901760
  %v1365 = vsub.f32 %v1015, %v1364
  %1366 = vmatmul.f32.gmra.mxu0 %v1365
  %v1367 = vpop.f32.mrf.mxu0
  %v1368 = vadd.f32 %v1264, %v1367
  %v1369 = vand.u32 %v1018, 4294901760
  %v1370 = vsub.f32 %v1018, %v1369
  %1371 = vmatmul.f32.gmra.mxu0 %v1370
  %v1372 = vpop.f32.mrf.mxu0
  %v1373 = vadd.f32 %v1268, %v1372
  %1374 = vdwg.mxu0
  %1375 = vmatpush.msra.mxu0 0.0
  %1376 = vmatpush.msra.mxu0 0.0
  %1377 = vmatpush.msra.mxu0 0.0
  %1378 = vmatpush.msra.mxu0 0.0
  %1379 = vmatpush.msra.mxu0 0.0
  %1380 = vmatpush.msra.mxu0 0.0
  %1381 = vmatpush.msra.mxu0 0.0
  %1382 = vmatpush.msra.mxu0 0.0
  %1383 = vmatpush.msra.mxu0 0.0
  %1384 = vmatpush.msra.mxu0 0.0
  %1385 = vmatpush.msra.mxu0 0.0
  %1386 = vmatpush.msra.mxu0 0.0
  %v1387 = vand.u32 %v935, 4294901760
  %1388 = vmatpush.msra.mxu0 %v1387
  %v1389 = vand.u32 %v934, 4294901760
  %1390 = vmatpush.msra.mxu0 %v1389
  %v1391 = vand.u32 %v933, 4294901760
  %1392 = vmatpush.msra.mxu0 %v1391
  %v1393 = vand.u32 %v932, 4294901760
  %1394 = vmatpush.msra.mxu0 %v1393
  %v1395 = vand.u32 %v973, 4294901760
  %v1396 = vsub.f32 %v973, %v1395
  %v1397 = vand.u32 %v1396, 4294901760
  %1398 = vmatmul.f32.gmra.mxu0 %v1397
  %v1399 = vpop.f32.mrf.mxu0
  %v1400 = vadd.f32 %v1298, %v1399
  %v1401 = vand.u32 %v976, 4294901760
  %v1402 = vsub.f32 %v976, %v1401
  %v1403 = vand.u32 %v1402, 4294901760
  %1404 = vmatmul.f32.gmra.mxu0 %v1403
  %v1405 = vpop.f32.mrf.mxu0
  %v1406 = vadd.f32 %v1303, %v1405
  %v1407 = vand.u32 %v979, 4294901760
  %v1408 = vsub.f32 %v979, %v1407
  %v1409 = vand.u32 %v1408, 4294901760
  %1410 = vmatmul.f32.gmra.mxu0 %v1409
  %v1411 = vpop.f32.mrf.mxu0
  %v1412 = vadd.f32 %v1308, %v1411
  %v1413 = vand.u32 %v982, 4294901760
  %v1414 = vsub.f32 %v982, %v1413
  %v1415 = vand.u32 %v1414, 4294901760
  %1416 = vmatmul.f32.gmra.mxu0 %v1415
  %v1417 = vpop.f32.mrf.mxu0
  %v1418 = vadd.f32 %v1313, %v1417
  %v1419 = vand.u32 %v985, 4294901760
  %v1420 = vsub.f32 %v985, %v1419
  %v1421 = vand.u32 %v1420, 4294901760
  %1422 = vmatmul.f32.gmra.mxu0 %v1421
  %v1423 = vpop.f32.mrf.mxu0
  %v1424 = vadd.f32 %v1318, %v1423
  %v1425 = vand.u32 %v988, 4294901760
  %v1426 = vsub.f32 %v988, %v1425
  %v1427 = vand.u32 %v1426, 4294901760
  %1428 = vmatmul.f32.gmra.mxu0 %v1427
  %v1429 = vpop.f32.mrf.mxu0
  %v1430 = vadd.f32 %v1323, %v1429
  %v1431 = vand.u32 %v991, 4294901760
  %v1432 = vsub.f32 %v991, %v1431
  %v1433 = vand.u32 %v1432, 4294901760
  %1434 = vmatmul.f32.gmra.mxu0 %v1433
  %v1435 = vpop.f32.mrf.mxu0
  %v1436 = vadd.f32 %v1328, %v1435
  %v1437 = vand.u32 %v994, 4294901760
  %v1438 = vsub.f32 %v994, %v1437
  %v1439 = vand.u32 %v1438, 4294901760
  %1440 = vmatmul.f32.gmra.mxu0 %v1439
  %v1441 = vpop.f32.mrf.mxu0
  %v1442 = vadd.f32 %v1333, %v1441
  %v1443 = vand.u32 %v997, 4294901760
  %v1444 = vsub.f32 %v997, %v1443
  %v1445 = vand.u32 %v1444, 4294901760
  %1446 = vmatmul.f32.gmra.mxu0 %v1445
  %v1447 = vpop.f32.mrf.mxu0
  %v1448 = vadd.f32 %v1338, %v1447
  %v1449 = vand.u32 %v1000, 4294901760
  %v1450 = vsub.f32 %v1000, %v1449
  %v1451 = vand.u32 %v1450, 4294901760
  %1452 = vmatmul.f32.gmra.mxu0 %v1451
  %v1453 = vpop.f32.mrf.mxu0
  %v1454 = vadd.f32 %v1343, %v1453
  %v1455 = vand.u32 %v1003, 4294901760
  %v1456 = vsub.f32 %v1003, %v1455
  %v1457 = vand.u32 %v1456, 4294901760
  %1458 = vmatmul.f32.gmra.mxu0 %v1457
  %v1459 = vpop.f32.mrf.mxu0
  %v1460 = vadd.f32 %v1348, %v1459
  %v1461 = vand.u32 %v1006, 4294901760
  %v1462 = vsub.f32 %v1006, %v1461
  %v1463 = vand.u32 %v1462, 4294901760
  %1464 = vmatmul.f32.gmra.mxu0 %v1463
  %v1465 = vpop.f32.mrf.mxu0
  %v1466 = vadd.f32 %v1353, %v1465
  %v1467 = vand.u32 %v1009, 4294901760
  %v1468 = vsub.f32 %v1009, %v1467
  %v1469 = vand.u32 %v1468, 4294901760
  %1470 = vmatmul.f32.gmra.mxu0 %v1469
  %v1471 = vpop.f32.mrf.mxu0
  %v1472 = vadd.f32 %v1358, %v1471
  %v1473 = vand.u32 %v1012, 4294901760
  %v1474 = vsub.f32 %v1012, %v1473
  %v1475 = vand.u32 %v1474, 4294901760
  %1476 = vmatmul.f32.gmra.mxu0 %v1475
  %v1477 = vpop.f32.mrf.mxu0
  %v1478 = vadd.f32 %v1363, %v1477
  %v1479 = vand.u32 %v1015, 4294901760
  %v1480 = vsub.f32 %v1015, %v1479
  %v1481 = vand.u32 %v1480, 4294901760
  %1482 = vmatmul.f32.gmra.mxu0 %v1481
  %v1483 = vpop.f32.mrf.mxu0
  %v1484 = vadd.f32 %v1368, %v1483
  %v1485 = vand.u32 %v1018, 4294901760
  %v1486 = vsub.f32 %v1018, %v1485
  %v1487 = vand.u32 %v1486, 4294901760
  %1488 = vmatmul.f32.gmra.mxu0 %v1487
  %v1489 = vpop.f32.mrf.mxu0
  %v1490 = vadd.f32 %v1373, %v1489
  %1491 = vdwg.mxu0
  %1492 = vmatpush.msra.mxu0 0.0
  %1493 = vmatpush.msra.mxu0 0.0
  %1494 = vmatpush.msra.mxu0 0.0
  %1495 = vmatpush.msra.mxu0 0.0
  %1496 = vmatpush.msra.mxu0 0.0
  %1497 = vmatpush.msra.mxu0 0.0
  %1498 = vmatpush.msra.mxu0 0.0
  %1499 = vmatpush.msra.mxu0 0.0
  %1500 = vmatpush.msra.mxu0 0.0
  %1501 = vmatpush.msra.mxu0 0.0
  %1502 = vmatpush.msra.mxu0 0.0
  %1503 = vmatpush.msra.mxu0 0.0
  %v1504 = vand.u32 %v935, 4294901760
  %v1505 = vsub.f32 %v935, %v1504
  %v1506 = vand.u32 %v1505, 4294901760
  %1507 = vmatpush.msra.mxu0 %v1506
  %v1508 = vand.u32 %v934, 4294901760
  %v1509 = vsub.f32 %v934, %v1508
  %v1510 = vand.u32 %v1509, 4294901760
  %1511 = vmatpush.msra.mxu0 %v1510
  %v1512 = vand.u32 %v933, 4294901760
  %v1513 = vsub.f32 %v933, %v1512
  %v1514 = vand.u32 %v1513, 4294901760
  %1515 = vmatpush.msra.mxu0 %v1514
  %v1516 = vand.u32 %v932, 4294901760
  %v1517 = vsub.f32 %v932, %v1516
  %v1518 = vand.u32 %v1517, 4294901760
  %1519 = vmatpush.msra.mxu0 %v1518
  %v1520 = vand.u32 %v973, 4294901760
  %1521 = vmatmul.f32.gmra.mxu0 %v1520
  %v1522 = vpop.f32.mrf.mxu0
  %v1523 = vadd.f32 %v1400, %v1522
  %v1524 = vand.u32 %v976, 4294901760
  %1525 = vmatmul.f32.gmra.mxu0 %v1524
  %v1526 = vpop.f32.mrf.mxu0
  %v1527 = vadd.f32 %v1406, %v1526
  %v1528 = vand.u32 %v979, 4294901760
  %1529 = vmatmul.f32.gmra.mxu0 %v1528
  %v1530 = vpop.f32.mrf.mxu0
  %v1531 = vadd.f32 %v1412, %v1530
  %v1532 = vand.u32 %v982, 4294901760
  %1533 = vmatmul.f32.gmra.mxu0 %v1532
  %v1534 = vpop.f32.mrf.mxu0
  %v1535 = vadd.f32 %v1418, %v1534
  %v1536 = vand.u32 %v985, 4294901760
  %1537 = vmatmul.f32.gmra.mxu0 %v1536
  %v1538 = vpop.f32.mrf.mxu0
  %v1539 = vadd.f32 %v1424, %v1538
  %v1540 = vand.u32 %v988, 4294901760
  %1541 = vmatmul.f32.gmra.mxu0 %v1540
  %v1542 = vpop.f32.mrf.mxu0
  %v1543 = vadd.f32 %v1430, %v1542
  %v1544 = vand.u32 %v991, 4294901760
  %1545 = vmatmul.f32.gmra.mxu0 %v1544
  %v1546 = vpop.f32.mrf.mxu0
  %v1547 = vadd.f32 %v1436, %v1546
  %v1548 = vand.u32 %v994, 4294901760
  %1549 = vmatmul.f32.gmra.mxu0 %v1548
  %v1550 = vpop.f32.mrf.mxu0
  %v1551 = vadd.f32 %v1442, %v1550
  %v1552 = vand.u32 %v997, 4294901760
  %1553 = vmatmul.f32.gmra.mxu0 %v1552
  %v1554 = vpop.f32.mrf.mxu0
  %v1555 = vadd.f32 %v1448, %v1554
  %v1556 = vand.u32 %v1000, 4294901760
  %1557 = vmatmul.f32.gmra.mxu0 %v1556
  %v1558 = vpop.f32.mrf.mxu0
  %v1559 = vadd.f32 %v1454, %v1558
  %v1560 = vand.u32 %v1003, 4294901760
  %1561 = vmatmul.f32.gmra.mxu0 %v1560
  %v1562 = vpop.f32.mrf.mxu0
  %v1563 = vadd.f32 %v1460, %v1562
  %v1564 = vand.u32 %v1006, 4294901760
  %1565 = vmatmul.f32.gmra.mxu0 %v1564
  %v1566 = vpop.f32.mrf.mxu0
  %v1567 = vadd.f32 %v1466, %v1566
  %v1568 = vand.u32 %v1009, 4294901760
  %1569 = vmatmul.f32.gmra.mxu0 %v1568
  %v1570 = vpop.f32.mrf.mxu0
  %v1571 = vadd.f32 %v1472, %v1570
  %v1572 = vand.u32 %v1012, 4294901760
  %1573 = vmatmul.f32.gmra.mxu0 %v1572
  %v1574 = vpop.f32.mrf.mxu0
  %v1575 = vadd.f32 %v1478, %v1574
  %v1576 = vand.u32 %v1015, 4294901760
  %1577 = vmatmul.f32.gmra.mxu0 %v1576
  %v1578 = vpop.f32.mrf.mxu0
  %v1579 = vadd.f32 %v1484, %v1578
  %v1580 = vand.u32 %v1018, 4294901760
  %1581 = vmatmul.f32.gmra.mxu0 %v1580
  %v1582 = vpop.f32.mrf.mxu0
  %v1583 = vadd.f32 %v1490, %v1582
  %1584 = vdwg.mxu0
  %1585 = vmatpush.msra.mxu0 0.0
  %1586 = vmatpush.msra.mxu0 0.0
  %1587 = vmatpush.msra.mxu0 0.0
  %1588 = vmatpush.msra.mxu0 0.0
  %1589 = vmatpush.msra.mxu0 0.0
  %1590 = vmatpush.msra.mxu0 0.0
  %1591 = vmatpush.msra.mxu0 0.0
  %1592 = vmatpush.msra.mxu0 0.0
  %1593 = vmatpush.msra.mxu0 0.0
  %1594 = vmatpush.msra.mxu0 0.0
  %1595 = vmatpush.msra.mxu0 0.0
  %1596 = vmatpush.msra.mxu0 0.0
  %v1597 = vand.u32 %v935, 4294901760
  %1598 = vmatpush.msra.mxu0 %v1597
  %v1599 = vand.u32 %v934, 4294901760
  %1600 = vmatpush.msra.mxu0 %v1599
  %v1601 = vand.u32 %v933, 4294901760
  %1602 = vmatpush.msra.mxu0 %v1601
  %v1603 = vand.u32 %v932, 4294901760
  %1604 = vmatpush.msra.mxu0 %v1603
  %v1605 = vand.u32 %v973, 4294901760
  %1606 = vmatmul.f32.gmra.mxu0 %v1605
  %v1607 = vpop.f32.mrf.mxu0
  %v1608 = vadd.f32 %v1523, %v1607
  %v1609 = vand.u32 %v976, 4294901760
  %1610 = vmatmul.f32.gmra.mxu0 %v1609
  %v1611 = vpop.f32.mrf.mxu0
  %v1612 = vadd.f32 %v1527, %v1611
  %v1613 = vand.u32 %v979, 4294901760
  %1614 = vmatmul.f32.gmra.mxu0 %v1613
  %v1615 = vpop.f32.mrf.mxu0
  %v1616 = vadd.f32 %v1531, %v1615
  %v1617 = vand.u32 %v982, 4294901760
  %1618 = vmatmul.f32.gmra.mxu0 %v1617
  %v1619 = vpop.f32.mrf.mxu0
  %v1620 = vadd.f32 %v1535, %v1619
  %v1621 = vand.u32 %v985, 4294901760
  %1622 = vmatmul.f32.gmra.mxu0 %v1621
  %v1623 = vpop.f32.mrf.mxu0
  %v1624 = vadd.f32 %v1539, %v1623
  %v1625 = vand.u32 %v988, 4294901760
  %1626 = vmatmul.f32.gmra.mxu0 %v1625
  %v1627 = vpop.f32.mrf.mxu0
  %v1628 = vadd.f32 %v1543, %v1627
  %v1629 = vand.u32 %v991, 4294901760
  %1630 = vmatmul.f32.gmra.mxu0 %v1629
  %v1631 = vpop.f32.mrf.mxu0
  %v1632 = vadd.f32 %v1547, %v1631
  %v1633 = vand.u32 %v994, 4294901760
  %1634 = vmatmul.f32.gmra.mxu0 %v1633
  %v1635 = vpop.f32.mrf.mxu0
  %v1636 = vadd.f32 %v1551, %v1635
  %v1637 = vand.u32 %v997, 4294901760
  %1638 = vmatmul.f32.gmra.mxu0 %v1637
  %v1639 = vpop.f32.mrf.mxu0
  %v1640 = vadd.f32 %v1555, %v1639
  %v1641 = vand.u32 %v1000, 4294901760
  %1642 = vmatmul.f32.gmra.mxu0 %v1641
  %v1643 = vpop.f32.mrf.mxu0
  %v1644 = vadd.f32 %v1559, %v1643
  %v1645 = vand.u32 %v1003, 4294901760
  %1646 = vmatmul.f32.gmra.mxu0 %v1645
  %v1647 = vpop.f32.mrf.mxu0
  %v1648 = vadd.f32 %v1563, %v1647
  %v1649 = vand.u32 %v1006, 4294901760
  %1650 = vmatmul.f32.gmra.mxu0 %v1649
  %v1651 = vpop.f32.mrf.mxu0
  %v1652 = vadd.f32 %v1567, %v1651
  %v1653 = vand.u32 %v1009, 4294901760
  %1654 = vmatmul.f32.gmra.mxu0 %v1653
  %v1655 = vpop.f32.mrf.mxu0
  %v1656 = vadd.f32 %v1571, %v1655
  %v1657 = vand.u32 %v1012, 4294901760
  %1658 = vmatmul.f32.gmra.mxu0 %v1657
  %v1659 = vpop.f32.mrf.mxu0
  %v1660 = vadd.f32 %v1575, %v1659
  %v1661 = vand.u32 %v1015, 4294901760
  %1662 = vmatmul.f32.gmra.mxu0 %v1661
  %v1663 = vpop.f32.mrf.mxu0
  %v1664 = vadd.f32 %v1579, %v1663
  %v1665 = vand.u32 %v1018, 4294901760
  %1666 = vmatmul.f32.gmra.mxu0 %v1665
  %v1667 = vpop.f32.mrf.mxu0
  %v1668 = vadd.f32 %v1583, %v1667
  %1669 = vdwg.mxu0
  %vm1670 = vcmask 64512
  %1671 = vst.msk [vmem:[%s7] sm:$0xff] %vm1670, %v1608
  %1672 = vst.msk [vmem:[%s7 + $0x8] sm:$0xff] %vm1670, %v1612
  %1673 = vst.msk [vmem:[%s7 + $0x10] sm:$0xff] %vm1670, %v1616
  %1674 = vst.msk [vmem:[%s7 + $0x18] sm:$0xff] %vm1670, %v1620
  %1675 = vst.msk [vmem:[%s7 + $0x20] sm:$0xff] %vm1670, %v1624
  %1676 = vst.msk [vmem:[%s7 + $0x28] sm:$0xff] %vm1670, %v1628
  %1677 = vst.msk [vmem:[%s7 + $0x30] sm:$0xff] %vm1670, %v1632
  %1678 = vst.msk [vmem:[%s7 + $0x38] sm:$0xff] %vm1670, %v1636
  %1679 = vst.msk [vmem:[%s7 + $0x40] sm:$0xff] %vm1670, %v1640
  %1680 = vst.msk [vmem:[%s7 + $0x48] sm:$0xff] %vm1670, %v1644
  %1681 = vst.msk [vmem:[%s7 + $0x50] sm:$0xff] %vm1670, %v1648
  %1682 = vst.msk [vmem:[%s7 + $0x58] sm:$0xff] %vm1670, %v1652
  %1683 = vst.msk [vmem:[%s7 + $0x60] sm:$0xff] %vm1670, %v1656
  %1684 = vst.msk [vmem:[%s7 + $0x68] sm:$0xff] %vm1670, %v1660
  %1685 = vst.msk [vmem:[%s7 + $0x70] sm:$0xff] %vm1670, %v1664
  %1686 = vst.msk [vmem:[%s7 + $0x78] sm:$0xff] %vm1670, %v1668
  // Predicated region
  $region30: #{mlp_pallas.1} parent=0 // pred_check
    _
  $region31: #{mlp_pallas.1} parent=0 // pred_check_branch
    %1688 = sbr.rel (0) target = $region33
  $region32: #{mlp_pallas.1} parent=0 // pred_region
    _
  $region33: #{mlp_pallas.1} parent=0 // pred_fallthru
    _
  // Predicated region
  $region34: #{mlp_pallas.1} parent=0 // pred_check
    _
  $region35: #{mlp_pallas.1} parent=0 // pred_check_branch
    %1690 = sbr.rel (0) target = $region37
  $region36: #{mlp_pallas.1} parent=0 // pred_region
    _
  $region37: #{mlp_pallas.1} parent=0 // pred_fallthru
    _

</llo_original>
